<compile_context>
chip_gen: v7x
topology: tpu7x:2x2x1
jax: 0.10.0
libtpu: 0.0.40
codegen_flags: <defaults>
</compile_context>

<pallas_src>
import math

import jax
import jax.numpy as jnp
from jax.experimental import pallas as pl
from jax.experimental.pallas import tpu as pltpu


# ---------------------------------------------------------------------------
# Block-size selection helpers
# ---------------------------------------------------------------------------
def _padded_trailing_bytes(trailing_shape, dtype):
    """Approximate VMEM bytes of one member's block slice, honoring the
    (8, 128) tile padding on the last two dims."""
    dims = list(trailing_shape)
    if len(dims) >= 1:
        dims[-1] = -(-dims[-1] // 128) * 128
    if len(dims) >= 2:
        dims[-2] = -(-dims[-2] // 8) * 8
    n = 1
    for d in dims:
        n *= d
    return n * jnp.dtype(dtype).itemsize


def _choose_members_per_block(population_size, per_member_pipeline_bytes,
                              vmem_block_budget_bytes, target_min_grid_steps=2):
    """Largest divisor of P whose (double-buffered) blocks fit the VMEM budget,
    preferring to keep >= target_min_grid_steps grid steps (v7x has 2 TCs)."""
    mb_cap = max(1, int(vmem_block_budget_bytes // max(per_member_pipeline_bytes, 1)))
    divisors = [d for d in range(1, population_size + 1) if population_size % d == 0]
    prefer = [d for d in divisors
              if d <= mb_cap and population_size // d >= target_min_grid_steps]
    if prefer:
        return max(prefer)
    fits = [d for d in divisors if d <= mb_cap]
    return max(fits) if fits else 1


# ---------------------------------------------------------------------------
# One-time parameter packing (do NOT call this inside the per-step forward)
# ---------------------------------------------------------------------------
def pack_vectorized_q_params(q1_params, q2_params, dtype=jnp.float32):
    """Pack both heads' params into one (W, B) pair per layer.

    Per layer l:
      W_l: (P, 2, Din_l, Dout_l)   (heads stacked on axis 1)
      B_l: (P, 2, 1,     Dout_l)
    Final layer (per-head Dout == 1) is packed head-selectively into 2 output
    columns so the kernel can emit the (B, 2) slab with a single add:
      W_L: (P, 2, Dlast, 2),  W_L[:,0,:,0]=w_q1, W_L[:,1,:,1]=w_q2, rest 0.
    """
    w1s, b1s = q1_params
    w2s, b2s = q2_params
    num_layers = len(w1s)
    assert len(w2s) == num_layers
    assert w1s[-1].shape[-1] == 1 and w2s[-1].shape[-1] == 1, (
        "VectorizedContinuousQNetwork heads must end in output_dim == 1")

    packed = []
    for l in range(num_layers):
        wq1, wq2 = w1s[l], w2s[l]
        bq1, bq2 = b1s[l], b2s[l]
        if l < num_layers - 1:
            w = jnp.stack([wq1, wq2], axis=1)                       # (P,2,Din,Dout)
            b = jnp.stack([bq1, bq2], axis=1)                       # (P,2,1,Dout)
        else:
            zw = jnp.zeros_like(wq1)
            w = jnp.stack([jnp.concatenate([wq1, zw], axis=-1),     # q1 -> col 0
                           jnp.concatenate([zw, wq2], axis=-1)],    # q2 -> col 1
                          axis=1)                                   # (P,2,Dlast,2)
            zb = jnp.zeros_like(bq1)
            b = jnp.stack([jnp.concatenate([bq1, zb], axis=-1),
                           jnp.concatenate([zb, bq2], axis=-1)],
                          axis=1)                                   # (P,2,1,2)
        packed.append((w.astype(dtype), b.astype(dtype)))
    return packed


# ---------------------------------------------------------------------------
# Pallas kernel: both Q heads, a block of population members per grid step
# ---------------------------------------------------------------------------
def _make_fused_q_kernel(num_layers, compute_dtype):
    def _feed(v):
        # Optionally feed the MXU in bf16 (v6e/v7x); accumulation stays f32 via
        # preferred_element_type, bias add / ReLU stay f32.
        return v if compute_dtype is None else v.astype(compute_dtype)

    def kernel(obs_ref, act_ref, *rest):
        out_ref = rest[-1]
        param_refs = rest[:-1]

        # Replaces torch.cat([obs, act], -1): one in-VMEM concat, shared by
        # both heads, never materialized in HBM.
        x = _feed(jnp.concatenate([obs_ref[...], act_ref[...]], axis=-1))  # (mb,B,Din)
        h1 = x
        h2 = x

        for l in range(num_layers):
            w = param_refs[2 * l][...]        # (mb, 2, Din_l, Dout_l) — one load/layer
            b = param_refs[2 * l + 1][...]    # (mb, 2, 1,     Dout_l)
            o1 = jnp.einsum("mbi,mio->mbo", h1, _feed(w[:, 0]),
                            preferred_element_type=jnp.float32) + b[:, 0]
            o2 = jnp.einsum("mbi,mio->mbo", h2, _feed(w[:, 1]),
                            preferred_element_type=jnp.float32) + b[:, 1]
            if l < num_layers - 1:
                h1 = _feed(jnp.maximum(o1, 0.0))
                h2 = _feed(jnp.maximum(o2, 0.0))
            else:
                # Final layer is head-selective (q1 in col 0, q2 in col 1), so
                # the sum IS the (mb, B, 2) output slab — single store per step.
                out_ref[...] = (o1 + o2).astype(out_ref.dtype)

    return kernel


# ---------------------------------------------------------------------------
# Wrapper: VectorizedContinuousQNetwork.forward
# ---------------------------------------------------------------------------
def vectorized_continuous_q_forward(observation, action, packed_params, *,
                                    compute_dtype=None,
                                    vmem_block_budget_bytes=24 * 1024 * 1024,
                                    target_min_grid_steps=2,
                                    interpret=False):
    """observation: [P, B, obs_dim]; action: [P, B, act_dim];
    packed_params: output of pack_vectorized_q_params (call it ONCE, outside
    the training/eval step). Returns (q1, q2), each [P, B, 1]."""
    P, B, obs_dim = observation.shape
    act_dim = action.shape[-1]
    out_dtype = observation.dtype
    num_layers = len(packed_params)

    # --- VMEM-budget-driven member blocking (double-buffered blocks) ---------
    per_member = (_padded_trailing_bytes((B, obs_dim), observation.dtype)
                  + _padded_trailing_bytes((B, act_dim), action.dtype)
                  + _padded_trailing_bytes((B, 2), out_dtype))
    for w, b in packed_params:
        per_member += _padded_trailing_bytes(w.shape[1:], w.dtype)
        per_member += _padded_trailing_bytes(b.shape[1:], b.dtype)
    mb = _choose_members_per_block(P, 2 * per_member, vmem_block_budget_bytes,
                                   target_min_grid_steps)
    grid = (P // mb,)

    # --- specs / args --------------------------------------------------------
    args = [observation, action]
    in_specs = [
        pl.BlockSpec((mb, B, obs_dim), lambda p: (p, 0, 0)),
        pl.BlockSpec((mb, B, act_dim), lambda p: (p, 0, 0)),
    ]
    for w, b in packed_params:
        in_specs.append(pl.BlockSpec((mb,) + w.shape[1:], lambda p: (p, 0, 0, 0)))
        args.append(w)
        in_specs.append(pl.BlockSpec((mb,) + b.shape[1:], lambda p: (p, 0, 0, 0)))
        args.append(b)
    out_spec = pl.BlockSpec((mb, B, 2), lambda p: (p, 0, 0))

    # --- advisory cost estimate ----------------------------------------------
    flops = 0
    for w, _ in packed_params:
        flops += 2 * P * 2 * B * w.shape[-2] * w.shape[-1]
    bytes_accessed = int(sum(int(a.size) * a.dtype.itemsize for a in args)
                         + P * B * 2 * jnp.dtype(out_dtype).itemsize)

    out = pl.pallas_call(
        _make_fused_q_kernel(num_layers, compute_dtype),
        out_shape=jax.ShapeDtypeStruct((P, B, 2), out_dtype),
        grid=grid,
        in_specs=in_specs,
        out_specs=out_spec,
        compiler_params=pltpu.CompilerParams(
            dimension_semantics=("parallel",),
            vmem_limit_bytes=48 * 1024 * 1024),
        cost_estimate=pl.CostEstimate(flops=flops, transcendentals=0,
                                      bytes_accessed=bytes_accessed),
        interpret=interpret,
    )(*args)

    # Single (P, B, 2) slab -> the module's two (P, B, 1) outputs.
    return out[..., 0:1], out[..., 1:2]


# ---------------------------------------------------------------------------
# Parameter construction (deterministic, mimics the PyTorch init scheme)
# ---------------------------------------------------------------------------
def init_vectorized_mlp_params(key, population_size, input_dim, output_dim, layers_dim):
    dims = [input_dim] + list(layers_dim) + [output_dim]
    weights, biases = [], []
    for din, dout in zip(dims[:-1], dims[1:]):
        key, kw, kb = jax.random.split(key, 3)
        bound = 1.0 / math.sqrt(din)
        weights.append(
            jax.random.uniform(kw, (population_size, din, dout), jnp.float32, -bound, bound))
        biases.append(
            jax.random.uniform(kb, (population_size, 1, dout), jnp.float32, -bound, bound))
    return weights, biases, key


# ---------------------------------------------------------------------------
# Plain-JAX reference
# ---------------------------------------------------------------------------
def _reference_mlp(x, weights, biases):
    h = x
    n = len(weights)
    for l, (w, b) in enumerate(zip(weights, biases)):
        h = jnp.einsum("pbi,pio->pbo", h, w) + b
        if l < n - 1:
            h = jnp.maximum(h, 0.0)
    return h


if __name__ == "__main__":
    population_size = 4
    batch = 8
    observation_dim = 12
    action_dim = 4
    layers_dim = (32, 32)

    key = jax.random.PRNGKey(0)
    key, k_obs, k_act = jax.random.split(key, 3)
    observation = jax.random.normal(
        k_obs, (population_size, batch, observation_dim), jnp.float32)
    action = jax.random.normal(k_act, (population_size, batch, action_dim), jnp.float32)

    w1, b1, key = init_vectorized_mlp_params(
        key, population_size, observation_dim + action_dim, 1, layers_dim)
    w2, b2, key = init_vectorized_mlp_params(
        key, population_size, observation_dim + action_dim, 1, layers_dim)

    # Reference (matches the PyTorch module's forward).
    cat = jnp.concatenate([observation, action], axis=-1)
    q1_ref = _reference_mlp(cat, w1, b1)
    q2_ref = _reference_mlp(cat, w2, b2)

    # --- f32 path (default): packing done once, outside the jitted forward ---
    packed_f32 = jax.tree_util.tree_map(
        lambda x: x, pack_vectorized_q_params((w1, b1), (w2, b2), dtype=jnp.float32))
    fwd = jax.jit(vectorized_continuous_q_forward)
    q1, q2 = fwd(observation, action, packed_f32)
    jax.block_until_ready((q1, q2))

    assert q1.shape == (population_size, batch, 1)
    assert q2.shape == (population_size, batch, 1)
    assert jnp.allclose(q1, q1_ref, atol=1e-5, rtol=1e-5)
    assert jnp.allclose(q2, q2_ref, atol=1e-5, rtol=1e-5)

    # --- optional narrow-weight / bf16-MXU path (halves weight DMA bytes) ----
    packed_bf16 = pack_vectorized_q_params((w1, b1), (w2, b2), dtype=jnp.bfloat16)
    fwd_bf16 = jax.jit(
        lambda o, a, p: vectorized_continuous_q_forward(
            o, a, p, compute_dtype=jnp.bfloat16))
    q1_b, q2_b = fwd_bf16(observation, action, packed_bf16)
    jax.block_until_ready((q1_b, q2_b))
    assert jnp.allclose(q1_b, q1_ref, atol=1e-1, rtol=1e-1)
    assert jnp.allclose(q2_b, q2_ref, atol=1e-1, rtol=1e-1)

    print("KERNEL_OK")
</pallas_src>

<mosaic_0001>
module attributes {stable_mosaic.version = 11 : i64} {
  func.func @kernel(%arg0: i32, %arg1: memref<2x8x12xf32, #tpu.memory_space<vmem>>, %arg2: memref<2x8x4xf32, #tpu.memory_space<vmem>>, %arg3: memref<2x2x16x32xf32, #tpu.memory_space<vmem>>, %arg4: memref<2x2x1x32xf32, #tpu.memory_space<vmem>>, %arg5: memref<2x2x32x32xf32, #tpu.memory_space<vmem>>, %arg6: memref<2x2x1x32xf32, #tpu.memory_space<vmem>>, %arg7: memref<2x2x32x2xf32, #tpu.memory_space<vmem>>, %arg8: memref<2x2x1x2xf32, #tpu.memory_space<vmem>>, %arg9: memref<2x8x2xf32, #tpu.memory_space<vmem>>) attributes {dimension_semantics = [#tpu.dimension_semantics<parallel>], iteration_bounds = array<i64: 2>, scalar_prefetch = 0 : i64, scratch_operands = 0 : i64, tpu.core_type = #tpu.core_type<tc>, window_params = [{transform_indices = @transform_0, window_bounds = array<i64: 2, 8, 12>}, {transform_indices = @transform_1, window_bounds = array<i64: 2, 8, 4>}, {transform_indices = @transform_2, window_bounds = array<i64: 2, 2, 16, 32>}, {transform_indices = @transform_3, window_bounds = array<i64: 2, 2, 1, 32>}, {transform_indices = @transform_4, window_bounds = array<i64: 2, 2, 32, 32>}, {transform_indices = @transform_5, window_bounds = array<i64: 2, 2, 1, 32>}, {transform_indices = @transform_6, window_bounds = array<i64: 2, 2, 32, 2>}, {transform_indices = @transform_7, window_bounds = array<i64: 2, 2, 1, 2>}, {transform_indices = @transform_8, window_bounds = array<i64: 2, 8, 2>}]} {
    %c0 = arith.constant 0 : index
    %c0_0 = arith.constant 0 : index
    %c0_1 = arith.constant 0 : index
    %0 = vector.load %arg1[%c0, %c0_0, %c0_1] : memref<2x8x12xf32, #tpu.memory_space<vmem>>, vector<2x8x12xf32>
    %c0_2 = arith.constant 0 : index
    %c0_3 = arith.constant 0 : index
    %c0_4 = arith.constant 0 : index
    %1 = vector.load %arg2[%c0_2, %c0_3, %c0_4] : memref<2x8x4xf32, #tpu.memory_space<vmem>>, vector<2x8x4xf32>
    %2 = tpu.concatenate %0, %1 in 2 : vector<2x8x12xf32>, vector<2x8x4xf32> -> vector<2x8x16xf32>
    %c0_5 = arith.constant 0 : index
    %c0_6 = arith.constant 0 : index
    %c0_7 = arith.constant 0 : index
    %c0_8 = arith.constant 0 : index
    %3 = vector.load %arg3[%c0_5, %c0_6, %c0_7, %c0_8] : memref<2x2x16x32xf32, #tpu.memory_space<vmem>>, vector<2x2x16x32xf32>
    %c0_9 = arith.constant 0 : index
    %c0_10 = arith.constant 0 : index
    %c0_11 = arith.constant 0 : index
    %c0_12 = arith.constant 0 : index
    %4 = vector.load %arg4[%c0_9, %c0_10, %c0_11, %c0_12] : memref<2x2x1x32xf32, #tpu.memory_space<vmem>>, vector<2x2x1x32xf32>
    %5 = vector.extract_strided_slice %3 {offsets = [0, 0, 0, 0], sizes = [2, 1, 16, 32], strides = [1, 1, 1, 1]} : vector<2x2x16x32xf32> to vector<2x1x16x32xf32>
    %6 = vector.shape_cast %5 : vector<2x1x16x32xf32> to vector<2x16x32xf32>
    "tpu.trace_start"() <{level = 10 : i32, message = "mbi,mio->mbo"}> : () -> ()
    %cst = arith.constant dense<0.000000e+00> : vector<2x8x32xf32>
    %7 = tpu.matmul %2, %6, %cst {dimension_numbers = #tpu.dot_dimension_numbers<[2], [1], [1], [2], [0, 0, 0, 1, 1, 2], [0], [0]>} : vector<2x8x16xf32>, vector<2x16x32xf32>, vector<2x8x32xf32> -> vector<2x8x32xf32>
    "tpu.trace_stop"() : () -> ()
    %8 = vector.extract_strided_slice %4 {offsets = [0, 0, 0, 0], sizes = [2, 1, 1, 32], strides = [1, 1, 1, 1]} : vector<2x2x1x32xf32> to vector<2x1x1x32xf32>
    %9 = vector.shape_cast %8 : vector<2x1x1x32xf32> to vector<2x1x32xf32>
    %10 = vector.broadcast %9 : vector<2x1x32xf32> to vector<2x8x32xf32>
    %11 = arith.addf %7, %10 : vector<2x8x32xf32>
    %12 = vector.extract_strided_slice %3 {offsets = [0, 1, 0, 0], sizes = [2, 1, 16, 32], strides = [1, 1, 1, 1]} : vector<2x2x16x32xf32> to vector<2x1x16x32xf32>
    %13 = vector.shape_cast %12 : vector<2x1x16x32xf32> to vector<2x16x32xf32>
    "tpu.trace_start"() <{level = 10 : i32, message = "mbi,mio->mbo"}> : () -> ()
    %cst_13 = arith.constant dense<0.000000e+00> : vector<2x8x32xf32>
    %14 = tpu.matmul %2, %13, %cst_13 {dimension_numbers = #tpu.dot_dimension_numbers<[2], [1], [1], [2], [0, 0, 0, 1, 1, 2], [0], [0]>} : vector<2x8x16xf32>, vector<2x16x32xf32>, vector<2x8x32xf32> -> vector<2x8x32xf32>
    "tpu.trace_stop"() : () -> ()
    %15 = vector.extract_strided_slice %4 {offsets = [0, 1, 0, 0], sizes = [2, 1, 1, 32], strides = [1, 1, 1, 1]} : vector<2x2x1x32xf32> to vector<2x1x1x32xf32>
    %16 = vector.shape_cast %15 : vector<2x1x1x32xf32> to vector<2x1x32xf32>
    %17 = vector.broadcast %16 : vector<2x1x32xf32> to vector<2x8x32xf32>
    %18 = arith.addf %14, %17 : vector<2x8x32xf32>
    %cst_14 = arith.constant 0.000000e+00 : f32
    %19 = vector.broadcast %cst_14 : f32 to vector<2x8x32xf32>
    %20 = arith.maximumf %11, %19 : vector<2x8x32xf32>
    %cst_15 = arith.constant 0.000000e+00 : f32
    %21 = vector.broadcast %cst_15 : f32 to vector<2x8x32xf32>
    %22 = arith.maximumf %18, %21 : vector<2x8x32xf32>
    %c0_16 = arith.constant 0 : index
    %c0_17 = arith.constant 0 : index
    %c0_18 = arith.constant 0 : index
    %c0_19 = arith.constant 0 : index
    %23 = vector.load %arg5[%c0_16, %c0_17, %c0_18, %c0_19] : memref<2x2x32x32xf32, #tpu.memory_space<vmem>>, vector<2x2x32x32xf32>
    %c0_20 = arith.constant 0 : index
    %c0_21 = arith.constant 0 : index
    %c0_22 = arith.constant 0 : index
    %c0_23 = arith.constant 0 : index
    %24 = vector.load %arg6[%c0_20, %c0_21, %c0_22, %c0_23] : memref<2x2x1x32xf32, #tpu.memory_space<vmem>>, vector<2x2x1x32xf32>
    %25 = vector.extract_strided_slice %23 {offsets = [0, 0, 0, 0], sizes = [2, 1, 32, 32], strides = [1, 1, 1, 1]} : vector<2x2x32x32xf32> to vector<2x1x32x32xf32>
    %26 = vector.shape_cast %25 : vector<2x1x32x32xf32> to vector<2x32x32xf32>
    "tpu.trace_start"() <{level = 10 : i32, message = "mbi,mio->mbo"}> : () -> ()
    %cst_24 = arith.constant dense<0.000000e+00> : vector<2x8x32xf32>
    %27 = tpu.matmul %20, %26, %cst_24 {dimension_numbers = #tpu.dot_dimension_numbers<[2], [1], [1], [2], [0, 0, 0, 1, 1, 2], [0], [0]>} : vector<2x8x32xf32>, vector<2x32x32xf32>, vector<2x8x32xf32> -> vector<2x8x32xf32>
    "tpu.trace_stop"() : () -> ()
    %28 = vector.extract_strided_slice %24 {offsets = [0, 0, 0, 0], sizes = [2, 1, 1, 32], strides = [1, 1, 1, 1]} : vector<2x2x1x32xf32> to vector<2x1x1x32xf32>
    %29 = vector.shape_cast %28 : vector<2x1x1x32xf32> to vector<2x1x32xf32>
    %30 = vector.broadcast %29 : vector<2x1x32xf32> to vector<2x8x32xf32>
    %31 = arith.addf %27, %30 : vector<2x8x32xf32>
    %32 = vector.extract_strided_slice %23 {offsets = [0, 1, 0, 0], sizes = [2, 1, 32, 32], strides = [1, 1, 1, 1]} : vector<2x2x32x32xf32> to vector<2x1x32x32xf32>
    %33 = vector.shape_cast %32 : vector<2x1x32x32xf32> to vector<2x32x32xf32>
    "tpu.trace_start"() <{level = 10 : i32, message = "mbi,mio->mbo"}> : () -> ()
    %cst_25 = arith.constant dense<0.000000e+00> : vector<2x8x32xf32>
    %34 = tpu.matmul %22, %33, %cst_25 {dimension_numbers = #tpu.dot_dimension_numbers<[2], [1], [1], [2], [0, 0, 0, 1, 1, 2], [0], [0]>} : vector<2x8x32xf32>, vector<2x32x32xf32>, vector<2x8x32xf32> -> vector<2x8x32xf32>
    "tpu.trace_stop"() : () -> ()
    %35 = vector.extract_strided_slice %24 {offsets = [0, 1, 0, 0], sizes = [2, 1, 1, 32], strides = [1, 1, 1, 1]} : vector<2x2x1x32xf32> to vector<2x1x1x32xf32>
    %36 = vector.shape_cast %35 : vector<2x1x1x32xf32> to vector<2x1x32xf32>
    %37 = vector.broadcast %36 : vector<2x1x32xf32> to vector<2x8x32xf32>
    %38 = arith.addf %34, %37 : vector<2x8x32xf32>
    %cst_26 = arith.constant 0.000000e+00 : f32
    %39 = vector.broadcast %cst_26 : f32 to vector<2x8x32xf32>
    %40 = arith.maximumf %31, %39 : vector<2x8x32xf32>
    %cst_27 = arith.constant 0.000000e+00 : f32
    %41 = vector.broadcast %cst_27 : f32 to vector<2x8x32xf32>
    %42 = arith.maximumf %38, %41 : vector<2x8x32xf32>
    %c0_28 = arith.constant 0 : index
    %c0_29 = arith.constant 0 : index
    %c0_30 = arith.constant 0 : index
    %c0_31 = arith.constant 0 : index
    %43 = vector.load %arg7[%c0_28, %c0_29, %c0_30, %c0_31] : memref<2x2x32x2xf32, #tpu.memory_space<vmem>>, vector<2x2x32x2xf32>
    %c0_32 = arith.constant 0 : index
    %c0_33 = arith.constant 0 : index
    %c0_34 = arith.constant 0 : index
    %c0_35 = arith.constant 0 : index
    %44 = vector.load %arg8[%c0_32, %c0_33, %c0_34, %c0_35] : memref<2x2x1x2xf32, #tpu.memory_space<vmem>>, vector<2x2x1x2xf32>
    %45 = vector.extract_strided_slice %43 {offsets = [0, 0, 0, 0], sizes = [2, 1, 32, 2], strides = [1, 1, 1, 1]} : vector<2x2x32x2xf32> to vector<2x1x32x2xf32>
    %46 = vector.shape_cast %45 : vector<2x1x32x2xf32> to vector<2x32x2xf32>
    "tpu.trace_start"() <{level = 10 : i32, message = "mbi,mio->mbo"}> : () -> ()
    %cst_36 = arith.constant dense<0.000000e+00> : vector<2x8x2xf32>
    %47 = tpu.matmul %40, %46, %cst_36 {dimension_numbers = #tpu.dot_dimension_numbers<[2], [1], [1], [2], [0, 0, 0, 1, 1, 2], [0], [0]>} : vector<2x8x32xf32>, vector<2x32x2xf32>, vector<2x8x2xf32> -> vector<2x8x2xf32>
    "tpu.trace_stop"() : () -> ()
    %48 = vector.extract_strided_slice %44 {offsets = [0, 0, 0, 0], sizes = [2, 1, 1, 2], strides = [1, 1, 1, 1]} : vector<2x2x1x2xf32> to vector<2x1x1x2xf32>
    %49 = vector.shape_cast %48 : vector<2x1x1x2xf32> to vector<2x1x2xf32>
    %50 = vector.broadcast %49 : vector<2x1x2xf32> to vector<2x8x2xf32>
    %51 = arith.addf %47, %50 : vector<2x8x2xf32>
    %52 = vector.extract_strided_slice %43 {offsets = [0, 1, 0, 0], sizes = [2, 1, 32, 2], strides = [1, 1, 1, 1]} : vector<2x2x32x2xf32> to vector<2x1x32x2xf32>
    %53 = vector.shape_cast %52 : vector<2x1x32x2xf32> to vector<2x32x2xf32>
    "tpu.trace_start"() <{level = 10 : i32, message = "mbi,mio->mbo"}> : () -> ()
    %cst_37 = arith.constant dense<0.000000e+00> : vector<2x8x2xf32>
    %54 = tpu.matmul %42, %53, %cst_37 {dimension_numbers = #tpu.dot_dimension_numbers<[2], [1], [1], [2], [0, 0, 0, 1, 1, 2], [0], [0]>} : vector<2x8x32xf32>, vector<2x32x2xf32>, vector<2x8x2xf32> -> vector<2x8x2xf32>
    "tpu.trace_stop"() : () -> ()
    %55 = vector.extract_strided_slice %44 {offsets = [0, 1, 0, 0], sizes = [2, 1, 1, 2], strides = [1, 1, 1, 1]} : vector<2x2x1x2xf32> to vector<2x1x1x2xf32>
    %56 = vector.shape_cast %55 : vector<2x1x1x2xf32> to vector<2x1x2xf32>
    %57 = vector.broadcast %56 : vector<2x1x2xf32> to vector<2x8x2xf32>
    %58 = arith.addf %54, %57 : vector<2x8x2xf32>
    %59 = arith.addf %51, %58 : vector<2x8x2xf32>
    %c0_38 = arith.constant 0 : index
    %c0_39 = arith.constant 0 : index
    %c0_40 = arith.constant 0 : index
    %60 = vector.load %arg9[%c0_38, %c0_39, %c0_40] : memref<2x8x2xf32, #tpu.memory_space<vmem>>, vector<2x8x2xf32>
    tpu.vector_store %arg9[%c0_38, %c0_39, %c0_40], %59 {strides = array<i32>} : memref<2x8x2xf32, #tpu.memory_space<vmem>>, vector<2x8x2xf32>,
    return
  }
  func.func @transform_0(%arg0: i32) -> (i32, i32, i32) {
    %c0_i32 = arith.constant 0 : i32
    %c0_i32_0 = arith.constant 0 : i32
    %c0_i32_1 = arith.constant 0 : i32
    return %arg0, %c0_i32, %c0_i32_0 : i32, i32, i32
  }
  func.func @transform_1(%arg0: i32) -> (i32, i32, i32) {
    %c0_i32 = arith.constant 0 : i32
    %c0_i32_0 = arith.constant 0 : i32
    %c0_i32_1 = arith.constant 0 : i32
    return %arg0, %c0_i32, %c0_i32_0 : i32, i32, i32
  }
  func.func @transform_2(%arg0: i32) -> (i32, i32, i32, i32) {
    %c0_i32 = arith.constant 0 : i32
    %c0_i32_0 = arith.constant 0 : i32
    %c0_i32_1 = arith.constant 0 : i32
    %c0_i32_2 = arith.constant 0 : i32
    return %arg0, %c0_i32, %c0_i32_0, %c0_i32_1 : i32, i32, i32, i32
  }
  func.func @transform_3(%arg0: i32) -> (i32, i32, i32, i32) {
    %c0_i32 = arith.constant 0 : i32
    %c0_i32_0 = arith.constant 0 : i32
    %c0_i32_1 = arith.constant 0 : i32
    %c0_i32_2 = arith.constant 0 : i32
    return %arg0, %c0_i32, %c0_i32_0, %c0_i32_1 : i32, i32, i32, i32
  }
  func.func @transform_4(%arg0: i32) -> (i32, i32, i32, i32) {
    %c0_i32 = arith.constant 0 : i32
    %c0_i32_0 = arith.constant 0 : i32
    %c0_i32_1 = arith.constant 0 : i32
    %c0_i32_2 = arith.constant 0 : i32
    return %arg0, %c0_i32, %c0_i32_0, %c0_i32_1 : i32, i32, i32, i32
  }
  func.func @transform_5(%arg0: i32) -> (i32, i32, i32, i32) {
    %c0_i32 = arith.constant 0 : i32
    %c0_i32_0 = arith.constant 0 : i32
    %c0_i32_1 = arith.constant 0 : i32
    %c0_i32_2 = arith.constant 0 : i32
    return %arg0, %c0_i32, %c0_i32_0, %c0_i32_1 : i32, i32, i32, i32
  }
  func.func @transform_6(%arg0: i32) -> (i32, i32, i32, i32) {
    %c0_i32 = arith.constant 0 : i32
    %c0_i32_0 = arith.constant 0 : i32
    %c0_i32_1 = arith.constant 0 : i32
    %c0_i32_2 = arith.constant 0 : i32
    return %arg0, %c0_i32, %c0_i32_0, %c0_i32_1 : i32, i32, i32, i32
  }
  func.func @transform_7(%arg0: i32) -> (i32, i32, i32, i32) {
    %c0_i32 = arith.constant 0 : i32
    %c0_i32_0 = arith.constant 0 : i32
    %c0_i32_1 = arith.constant 0 : i32
    %c0_i32_2 = arith.constant 0 : i32
    return %arg0, %c0_i32, %c0_i32_0, %c0_i32_1 : i32, i32, i32, i32
  }
  func.func @transform_8(%arg0: i32) -> (i32, i32, i32) {
    %c0_i32 = arith.constant 0 : i32
    %c0_i32_0 = arith.constant 0 : i32
    %c0_i32_1 = arith.constant 0 : i32
    return %arg0, %c0_i32, %c0_i32_0 : i32, i32, i32
  }
}

</mosaic_0001>

<llo_original>
// kernel: vectorized_continuous_q_forward.1
$region0: #{vectorized_continuous_q_forward.1}
  #allocation0 [shape = 'u32[]', space=smem, size = 0x4, offset = 0x4, fixed_abs, tag = 'smem constant byte address 0x4 - core index']
  #allocation1 [shape = 'u32[144,128]{1,0:T(1,128)}', space=vmem, size = 0x12000, scoped, tag = 'internal scratch']
  %s0 = inlined_call_operand.vmem [shape: f32[4,8,12], index: 0, kind: input, shape index: {}]
  %s1 = inlined_call_operand.vmem [shape: f32[4,8,4], index: 1, kind: input, shape index: {}]
  %s2 = inlined_call_operand.hbm [shape: f32[4,2,16,32], index: 2, kind: input, shape index: {}]
  %s3 = inlined_call_operand.vmem [shape: f32[4,2,1,32], index: 3, kind: input, shape index: {}]
  %s4 = inlined_call_operand.vmem [shape: f32[4,2,32,32], index: 4, kind: input, shape index: {}]
  %s5 = inlined_call_operand.vmem [shape: f32[4,2,1,32], index: 5, kind: input, shape index: {}]
  %s6 = inlined_call_operand.vmem [shape: f32[4,2,32,2], index: 6, kind: input, shape index: {}]
  %s7 = inlined_call_operand.vmem [shape: f32[4,2,1,2], index: 7, kind: input, shape index: {}]
  %s8 = inlined_call_operand.vmem [shape: f32[4,8,2], index: 8, kind: output, shape index: {}]
  %s9 = sld [smem:[#allocation0]]
  $region69: #{vectorized_continuous_q_forward.1} parent=0
    _
  %s11 = ssub.s32 1, %s9
  %s12 = scalar_select 0, %s11, %s9
  $region1: #{vectorized_continuous_q_forward.1} parent=0
    #allocation2 [shape = 'u8[65536]{0}', space=vmem, size = 0x10000, scoped, tag = 'input window, operand 2']
    #allocation3 [shape = 's32[2]{0}', space=sflag, size = 0x8, scoped, tag = 'scoped memory for vectorized_continuous_q_forward.1']
    %13 = vsyncpa [#allocation3], 0
    %s14 = scalar_lea.sflag [#allocation3], 1
    %15 = vsyncpa %s14, 0
    loop: start=0, step=1, limit=4
    $region2: #{vectorized_continuous_q_forward.1} parent=1 // loop_pre_header
      _
    $region3: #{vectorized_continuous_q_forward.1} parent=1 // loop_header
      %s17 = sphi 0, %s21
      %p18 = scmp.ge.s32.totalorder %s17, 4
      %s27 = sphi 0, %s29
      %s30 = sphi 0, %s27
      %s31 = sphi 0, %s30
      %s47 = sphi 0, %s31
      %s53 = sphi 0, %s55
      %s56 = sphi 0, %s53
      %s57 = sphi 0, %s56
      %s73 = sphi 0, %s57
      %s79 = sphi 0, %s81
      %s82 = sphi 0, %s79
      %s83 = sphi 0, %s82
      %s99 = sphi 0, %s83
      %s105 = sphi 0, %s107
      %s108 = sphi 0, %s105
      %s109 = sphi 0, %s108
      %s125 = sphi 0, %s109
      %s131 = sphi 0, %s133
      %s134 = sphi 0, %s131
      %s135 = sphi 0, %s134
      %s151 = sphi 0, %s135
      %s157 = sphi 0, %s159
      %s160 = sphi 0, %s157
      %s161 = sphi 0, %s160
      %s177 = sphi 0, %s161
      %s183 = sphi 0, %s185
      %s186 = sphi 0, %s183
      %s187 = sphi 0, %s186
      %s203 = sphi 0, %s187
      %s209 = sphi 0, %s211
      %s212 = sphi 0, %s209
      %s213 = sphi 0, %s212
      %s229 = sphi 0, %s213
      %s235 = sphi 0, %s237
      %s238 = sphi 0, %s235
      %s239 = sphi 0, %s238
      %s255 = sphi 0, %s239
    $region4: #{vectorized_continuous_q_forward.1} parent=1 // loop_header_branch
      %20 = sbr.rel (%p18) target = $region8
    $region5: #{vectorized_continuous_q_forward.1} parent=1 // loop_body
      %s22 = ssub.s32 %s17, 1
      %s23 = ssub.s32 %s17, 2
      %s24 = sadd.s32 %s17, 1
      %s25 = ssub.s32 %s17, %s24
      %p26 = scmp.eq.s32.totalorder %s25, 0
      %s28 = sadd.s32 %s27, 1
      %s29 = scalar_select %p26, %s27, %s28
      %p32 = pneg %p26
      %p33 = scmp.eq.s32.totalorder %s17, 1
      %p34 = por %p32, %p33
      %p35 = scmp.ne.s32.totalorder %s27, %s30
      %p36 = scmp.eq.s32.totalorder %s17, 0
      %p37 = por %p35, %p36
      %p38 = scmp.ne.s32.totalorder %s27, %s30
      %p39 = scmp.eq.s32.totalorder %s22, 1
      %p40 = por %p38, %p39
      %p41 = scmp.ne.s32.totalorder %s30, %s31
      %p42 = scmp.eq.s32.totalorder %s22, 0
      %p43 = por %p41, %p42
      %p44 = scmp.ne.s32.totalorder %s30, %s31
      %p45 = scmp.eq.s32.totalorder %s23, 1
      %p46 = por %p44, %p45
      %p48 = scmp.ne.s32.totalorder %s31, %s47
      %p49 = scmp.eq.s32.totalorder %s23, 0
      %p50 = por %p48, %p49
      %s51 = ssub.s32 %s17, %s24
      %p52 = scmp.eq.s32.totalorder %s51, 0
      %s54 = sadd.s32 %s53, 1
      %s55 = scalar_select %p52, %s53, %s54
      %p58 = pneg %p52
      %p59 = scmp.eq.s32.totalorder %s17, 1
      %p60 = por %p58, %p59
      %p61 = scmp.ne.s32.totalorder %s53, %s56
      %p62 = scmp.eq.s32.totalorder %s17, 0
      %p63 = por %p61, %p62
      %p64 = scmp.ne.s32.totalorder %s53, %s56
      %p65 = scmp.eq.s32.totalorder %s22, 1
      %p66 = por %p64, %p65
      %p67 = scmp.ne.s32.totalorder %s56, %s57
      %p68 = scmp.eq.s32.totalorder %s22, 0
      %p69 = por %p67, %p68
      %p70 = scmp.ne.s32.totalorder %s56, %s57
      %p71 = scmp.eq.s32.totalorder %s23, 1
      %p72 = por %p70, %p71
      %p74 = scmp.ne.s32.totalorder %s57, %s73
      %p75 = scmp.eq.s32.totalorder %s23, 0
      %p76 = por %p74, %p75
      %s77 = ssub.s32 %s17, %s24
      %p78 = scmp.eq.s32.totalorder %s77, 0
      %s80 = sadd.s32 %s79, 1
      %s81 = scalar_select %p78, %s79, %s80
      %p84 = pneg %p78
      %p85 = scmp.eq.s32.totalorder %s17, 1
      %p86 = por %p84, %p85
      %p87 = scmp.ne.s32.totalorder %s79, %s82
      %p88 = scmp.eq.s32.totalorder %s17, 0
      %p89 = por %p87, %p88
      %p90 = scmp.ne.s32.totalorder %s79, %s82
      %p91 = scmp.eq.s32.totalorder %s22, 1
      %p92 = por %p90, %p91
      %p93 = scmp.ne.s32.totalorder %s82, %s83
      %p94 = scmp.eq.s32.totalorder %s22, 0
      %p95 = por %p93, %p94
      %p96 = scmp.ne.s32.totalorder %s82, %s83
      %p97 = scmp.eq.s32.totalorder %s23, 1
      %p98 = por %p96, %p97
      %p100 = scmp.ne.s32.totalorder %s83, %s99
      %p101 = scmp.eq.s32.totalorder %s23, 0
      %p102 = por %p100, %p101
      %s103 = ssub.s32 %s17, %s24
      %p104 = scmp.eq.s32.totalorder %s103, 0
      %s106 = sadd.s32 %s105, 1
      %s107 = scalar_select %p104, %s105, %s106
      %p110 = pneg %p104
      %p111 = scmp.eq.s32.totalorder %s17, 1
      %p112 = por %p110, %p111
      %p113 = scmp.ne.s32.totalorder %s105, %s108
      %p114 = scmp.eq.s32.totalorder %s17, 0
      %p115 = por %p113, %p114
      %p116 = scmp.ne.s32.totalorder %s105, %s108
      %p117 = scmp.eq.s32.totalorder %s22, 1
      %p118 = por %p116, %p117
      %p119 = scmp.ne.s32.totalorder %s108, %s109
      %p120 = scmp.eq.s32.totalorder %s22, 0
      %p121 = por %p119, %p120
      %p122 = scmp.ne.s32.totalorder %s108, %s109
      %p123 = scmp.eq.s32.totalorder %s23, 1
      %p124 = por %p122, %p123
      %p126 = scmp.ne.s32.totalorder %s109, %s125
      %p127 = scmp.eq.s32.totalorder %s23, 0
      %p128 = por %p126, %p127
      %s129 = ssub.s32 %s17, %s24
      %p130 = scmp.eq.s32.totalorder %s129, 0
      %s132 = sadd.s32 %s131, 1
      %s133 = scalar_select %p130, %s131, %s132
      %p136 = pneg %p130
      %p137 = scmp.eq.s32.totalorder %s17, 1
      %p138 = por %p136, %p137
      %p139 = scmp.ne.s32.totalorder %s131, %s134
      %p140 = scmp.eq.s32.totalorder %s17, 0
      %p141 = por %p139, %p140
      %p142 = scmp.ne.s32.totalorder %s131, %s134
      %p143 = scmp.eq.s32.totalorder %s22, 1
      %p144 = por %p142, %p143
      %p145 = scmp.ne.s32.totalorder %s134, %s135
      %p146 = scmp.eq.s32.totalorder %s22, 0
      %p147 = por %p145, %p146
      %p148 = scmp.ne.s32.totalorder %s134, %s135
      %p149 = scmp.eq.s32.totalorder %s23, 1
      %p150 = por %p148, %p149
      %p152 = scmp.ne.s32.totalorder %s135, %s151
      %p153 = scmp.eq.s32.totalorder %s23, 0
      %p154 = por %p152, %p153
      %s155 = ssub.s32 %s17, %s24
      %p156 = scmp.eq.s32.totalorder %s155, 0
      %s158 = sadd.s32 %s157, 1
      %s159 = scalar_select %p156, %s157, %s158
      %p162 = pneg %p156
      %p163 = scmp.eq.s32.totalorder %s17, 1
      %p164 = por %p162, %p163
      %p165 = scmp.ne.s32.totalorder %s157, %s160
      %p166 = scmp.eq.s32.totalorder %s17, 0
      %p167 = por %p165, %p166
      %p168 = scmp.ne.s32.totalorder %s157, %s160
      %p169 = scmp.eq.s32.totalorder %s22, 1
      %p170 = por %p168, %p169
      %p171 = scmp.ne.s32.totalorder %s160, %s161
      %p172 = scmp.eq.s32.totalorder %s22, 0
      %p173 = por %p171, %p172
      %p174 = scmp.ne.s32.totalorder %s160, %s161
      %p175 = scmp.eq.s32.totalorder %s23, 1
      %p176 = por %p174, %p175
      %p178 = scmp.ne.s32.totalorder %s161, %s177
      %p179 = scmp.eq.s32.totalorder %s23, 0
      %p180 = por %p178, %p179
      %s181 = ssub.s32 %s17, %s24
      %p182 = scmp.eq.s32.totalorder %s181, 0
      %s184 = sadd.s32 %s183, 1
      %s185 = scalar_select %p182, %s183, %s184
      %p188 = pneg %p182
      %p189 = scmp.eq.s32.totalorder %s17, 1
      %p190 = por %p188, %p189
      %p191 = scmp.ne.s32.totalorder %s183, %s186
      %p192 = scmp.eq.s32.totalorder %s17, 0
      %p193 = por %p191, %p192
      %p194 = scmp.ne.s32.totalorder %s183, %s186
      %p195 = scmp.eq.s32.totalorder %s22, 1
      %p196 = por %p194, %p195
      %p197 = scmp.ne.s32.totalorder %s186, %s187
      %p198 = scmp.eq.s32.totalorder %s22, 0
      %p199 = por %p197, %p198
      %p200 = scmp.ne.s32.totalorder %s186, %s187
      %p201 = scmp.eq.s32.totalorder %s23, 1
      %p202 = por %p200, %p201
      %p204 = scmp.ne.s32.totalorder %s187, %s203
      %p205 = scmp.eq.s32.totalorder %s23, 0
      %p206 = por %p204, %p205
      %s207 = ssub.s32 %s17, %s24
      %p208 = scmp.eq.s32.totalorder %s207, 0
      %s210 = sadd.s32 %s209, 1
      %s211 = scalar_select %p208, %s209, %s210
      %p214 = pneg %p208
      %p215 = scmp.eq.s32.totalorder %s17, 1
      %p216 = por %p214, %p215
      %p217 = scmp.ne.s32.totalorder %s209, %s212
      %p218 = scmp.eq.s32.totalorder %s17, 0
      %p219 = por %p217, %p218
      %p220 = scmp.ne.s32.totalorder %s209, %s212
      %p221 = scmp.eq.s32.totalorder %s22, 1
      %p222 = por %p220, %p221
      %p223 = scmp.ne.s32.totalorder %s212, %s213
      %p224 = scmp.eq.s32.totalorder %s22, 0
      %p225 = por %p223, %p224
      %p226 = scmp.ne.s32.totalorder %s212, %s213
      %p227 = scmp.eq.s32.totalorder %s23, 1
      %p228 = por %p226, %p227
      %p230 = scmp.ne.s32.totalorder %s213, %s229
      %p231 = scmp.eq.s32.totalorder %s23, 0
      %p232 = por %p230, %p231
      %s233 = ssub.s32 %s17, %s24
      %p234 = scmp.eq.s32.totalorder %s233, 0
      %s236 = sadd.s32 %s235, 1
      %s237 = scalar_select %p234, %s235, %s236
      %p240 = pneg %p234
      %p241 = scmp.eq.s32.totalorder %s17, 1
      %p242 = por %p240, %p241
      %p243 = scmp.ne.s32.totalorder %s235, %s238
      %p244 = scmp.eq.s32.totalorder %s17, 0
      %p245 = por %p243, %p244
      %p246 = scmp.ne.s32.totalorder %s235, %s238
      %p247 = scmp.eq.s32.totalorder %s22, 1
      %p248 = por %p246, %p247
      %p249 = scmp.ne.s32.totalorder %s238, %s239
      %p250 = scmp.eq.s32.totalorder %s22, 0
      %p251 = por %p249, %p250
      %p252 = scmp.ne.s32.totalorder %s238, %s239
      %p253 = scmp.eq.s32.totalorder %s23, 1
      %p254 = por %p252, %p253
      %p256 = scmp.ne.s32.totalorder %s239, %s255
      %p257 = scmp.eq.s32.totalorder %s23, 0
      %p258 = por %p256, %p257
      %p259 = scmp.le.s32.totalorder 1, %s17
      %p260 = scmp.lt.s32.totalorder %s17, 3
      %p261 = pnand %p259, %p260
      %p262 = pneg %p261
      // Predicated region
      $region9: #{vectorized_continuous_q_forward.1} parent=5 // pred_check
        _
      $region10: #{vectorized_continuous_q_forward.1} parent=5 // pred_check_branch
        %264 = sbr.rel (%p261) target = $region12
      $region11: #{vectorized_continuous_q_forward.1} parent=5 // pred_region
        %s265 = ssub.s32 %s17, 1
      $region12: #{vectorized_continuous_q_forward.1} parent=5 // pred_fallthru
        _
      %p266 = scmp.lt.s32.totalorder %s17, 2
      // Predicated region
      $region13: #{vectorized_continuous_q_forward.1} parent=5 // pred_check
        %p267 = pneg %p266
      $region14: #{vectorized_continuous_q_forward.1} parent=5 // pred_check_branch
        %269 = sbr.rel (%p267) target = $region16
      $region15: #{vectorized_continuous_q_forward.1} parent=5 // pred_region
        // Predicated region
        $region17: #{vectorized_continuous_q_forward.1} parent=15 // pred_check
          %p270 = pneg %p37
        $region18: #{vectorized_continuous_q_forward.1} parent=15 // pred_check_branch
          %272 = sbr.rel (%p270) target = $region20
        $region19: #{vectorized_continuous_q_forward.1} parent=15 // pred_region
          %s273 = smul.u32 2, %s17
          %p274 = scmp.lt.s32.totalorder %s273, 3
          %s275 = scalar_select %p274, %s273, 3
          %s276 = smul.addr %s275, 8
          %s277 = scalar_lea.vmem %s0, %s276
          %s278 = smul.u32 2, %s17
        $region20: #{vectorized_continuous_q_forward.1} parent=15 // pred_fallthru
          _
        // Predicated region
        $region21: #{vectorized_continuous_q_forward.1} parent=15 // pred_check
          %p279 = pneg %p63
        $region22: #{vectorized_continuous_q_forward.1} parent=15 // pred_check_branch
          %281 = sbr.rel (%p279) target = $region24
        $region23: #{vectorized_continuous_q_forward.1} parent=15 // pred_region
          %s282 = smul.u32 2, %s17
          %p283 = scmp.lt.s32.totalorder %s282, 3
          %s284 = scalar_select %p283, %s282, 3
          %s285 = smul.addr %s284, 8
          %s286 = scalar_lea.vmem %s1, %s285
          %s287 = smul.u32 2, %s17
        $region24: #{vectorized_continuous_q_forward.1} parent=15 // pred_fallthru
          _
        // Predicated region
        $region25: #{vectorized_continuous_q_forward.1} parent=15 // pred_check
          %p288 = pneg %p89
        $region26: #{vectorized_continuous_q_forward.1} parent=15 // pred_check_branch
          %290 = sbr.rel (%p288) target = $region28
        $region27: #{vectorized_continuous_q_forward.1} parent=15 // pred_region
          %s291 = sand.u32 %s79, 1
          %s292 = scalar_lea.sflag [#allocation3], %s291
          %s293 = sand.u32 %s79, 1
          %s294 = smul.addr %s293, 64
          %s295 = scalar_lea.vmem [#allocation2], %s294
          %s296 = smul.u32 2, %s17
          %s298 = ssub.s32 1024, 1024
          %299 = vsyncadd %s292, %s298
          %s300 = smul.addr %s296, 4
          %s301 = smul.addr %s300, 128
          %s302 = scalar_lea.hbm %s2, %s301
          %s303 = sshll.u32 %s295, 4
          %s304 = int_to_ptr.vmem [resolvable:$true] %s303
          %309 = dma.hbm_to_vmem [thread:$0]  %s302, 1024, %s304, %s292, 128, 128, 8
        $region28: #{vectorized_continuous_q_forward.1} parent=15 // pred_fallthru
          _
        // Predicated region
        $region29: #{vectorized_continuous_q_forward.1} parent=15 // pred_check
          %p310 = pneg %p115
        $region30: #{vectorized_continuous_q_forward.1} parent=15 // pred_check_branch
          %312 = sbr.rel (%p310) target = $region32
        $region31: #{vectorized_continuous_q_forward.1} parent=15 // pred_region
          %s313 = smul.u32 2, %s17
          %p314 = scmp.lt.s32.totalorder %s313, 3
          %s315 = scalar_select %p314, %s313, 3
          %s316 = smul.addr %s315, 2
          %s317 = scalar_lea.vmem %s3, %s316
          %s318 = smul.u32 2, %s17
        $region32: #{vectorized_continuous_q_forward.1} parent=15 // pred_fallthru
          _
        // Predicated region
        $region33: #{vectorized_continuous_q_forward.1} parent=15 // pred_check
          %p319 = pneg %p141
        $region34: #{vectorized_continuous_q_forward.1} parent=15 // pred_check_branch
          %321 = sbr.rel (%p319) target = $region36
        $region35: #{vectorized_continuous_q_forward.1} parent=15 // pred_region
          %s322 = smul.u32 2, %s17
          %p323 = scmp.lt.s32.totalorder %s322, 3
          %s324 = scalar_select %p323, %s322, 3
          %s325 = smul.addr %s324, 8
          %s326 = smul.addr %s325, 8
          %s327 = scalar_lea.vmem %s4, %s326
          %s328 = smul.u32 2, %s17
        $region36: #{vectorized_continuous_q_forward.1} parent=15 // pred_fallthru
          _
        // Predicated region
        $region37: #{vectorized_continuous_q_forward.1} parent=15 // pred_check
          %p329 = pneg %p167
        $region38: #{vectorized_continuous_q_forward.1} parent=15 // pred_check_branch
          %331 = sbr.rel (%p329) target = $region40
        $region39: #{vectorized_continuous_q_forward.1} parent=15 // pred_region
          %s332 = smul.u32 2, %s17
          %p333 = scmp.lt.s32.totalorder %s332, 3
          %s334 = scalar_select %p333, %s332, 3
          %s335 = smul.addr %s334, 2
          %s336 = scalar_lea.vmem %s5, %s335
          %s337 = smul.u32 2, %s17
        $region40: #{vectorized_continuous_q_forward.1} parent=15 // pred_fallthru
          _
        // Predicated region
        $region41: #{vectorized_continuous_q_forward.1} parent=15 // pred_check
          %p338 = pneg %p193
        $region42: #{vectorized_continuous_q_forward.1} parent=15 // pred_check_branch
          %340 = sbr.rel (%p338) target = $region44
        $region43: #{vectorized_continuous_q_forward.1} parent=15 // pred_region
          %s341 = smul.u32 2, %s17
          %p342 = scmp.lt.s32.totalorder %s341, 3
          %s343 = scalar_select %p342, %s341, 3
          %s344 = smul.addr %s343, 8
          %s345 = smul.addr %s344, 8
          %s346 = scalar_lea.vmem %s6, %s345
          %s347 = smul.u32 2, %s17
        $region44: #{vectorized_continuous_q_forward.1} parent=15 // pred_fallthru
          _
        // Predicated region
        $region45: #{vectorized_continuous_q_forward.1} parent=15 // pred_check
          %p348 = pneg %p219
        $region46: #{vectorized_continuous_q_forward.1} parent=15 // pred_check_branch
          %350 = sbr.rel (%p348) target = $region48
        $region47: #{vectorized_continuous_q_forward.1} parent=15 // pred_region
          %s351 = smul.u32 2, %s17
          %p352 = scmp.lt.s32.totalorder %s351, 3
          %s353 = scalar_select %p352, %s351, 3
          %s354 = smul.addr %s353, 2
          %s355 = scalar_lea.vmem %s7, %s354
          %s356 = smul.u32 2, %s17
        $region48: #{vectorized_continuous_q_forward.1} parent=15 // pred_fallthru
          _
      $region16: #{vectorized_continuous_q_forward.1} parent=5 // pred_fallthru
        _
      %p357 = scmp.le.s32.totalorder 1, %s17
      %p358 = scmp.lt.s32.totalorder %s17, 3
      %p359 = pnand %p357, %p358
      %p360 = pneg %p359
      // Predicated region
      $region49: #{vectorized_continuous_q_forward.1} parent=5 // pred_check
        _
      $region50: #{vectorized_continuous_q_forward.1} parent=5 // pred_check_branch
        %362 = sbr.rel (%p359) target = $region52
      $region51: #{vectorized_continuous_q_forward.1} parent=5 // pred_region
        %s363 = ssub.s32 %s17, 1
        %s364 = sand.u32 %s82, 1
        %s365 = scalar_lea.sflag [#allocation3], %s364
        %s366 = sand.u32 %s82, 1
        %s367 = smul.addr %s366, 64
        %s368 = scalar_lea.vmem [#allocation2], %s367
        // Predicated region
        $region53: #{vectorized_continuous_q_forward.1} parent=51 // pred_check
          %p369 = pneg %p95
        $region54: #{vectorized_continuous_q_forward.1} parent=51 // pred_check_branch
          %371 = sbr.rel (%p369) target = $region56
        $region55: #{vectorized_continuous_q_forward.1} parent=51 // pred_region
          %372 = dma.done %s365, 1024
        $region56: #{vectorized_continuous_q_forward.1} parent=51 // pred_fallthru
          _
        %s373 = smul.u32 2, %s22
        %p374 = scmp.lt.s32.totalorder %s373, 3
        %s375 = scalar_select %p374, %s373, 3
        %s376 = smul.addr %s375, 8
        %s377 = scalar_lea.vmem %s0, %s376
        %p378 = pneg %p43
        %p379 = pneg %p40
        %s380 = smul.u32 2, %s22
        %p381 = scmp.lt.s32.totalorder %s380, 3
        %s382 = scalar_select %p381, %s380, 3
        %s383 = smul.addr %s382, 8
        %s384 = scalar_lea.vmem %s1, %s383
        %p385 = pneg %p69
        %p386 = pneg %p66
        %s387 = sand.u32 %s82, 1
        %s388 = scalar_lea.sflag [#allocation3], %s387
        %s389 = sand.u32 %s82, 1
        %s390 = smul.addr %s389, 64
        %s391 = scalar_lea.vmem [#allocation2], %s390
        %p392 = pneg %p95
        %p393 = pneg %p92
        %s394 = smul.u32 2, %s22
        %p395 = scmp.lt.s32.totalorder %s394, 3
        %s396 = scalar_select %p395, %s394, 3
        %s397 = smul.addr %s396, 2
        %s398 = scalar_lea.vmem %s3, %s397
        %p399 = pneg %p121
        %p400 = pneg %p118
        %s401 = smul.u32 2, %s22
        %p402 = scmp.lt.s32.totalorder %s401, 3
        %s403 = scalar_select %p402, %s401, 3
        %s404 = smul.addr %s403, 8
        %s405 = smul.addr %s404, 8
        %s406 = scalar_lea.vmem %s4, %s405
        %p407 = pneg %p147
        %p408 = pneg %p144
        %s409 = smul.u32 2, %s22
        %p410 = scmp.lt.s32.totalorder %s409, 3
        %s411 = scalar_select %p410, %s409, 3
        %s412 = smul.addr %s411, 2
        %s413 = scalar_lea.vmem %s5, %s412
        %p414 = pneg %p173
        %p415 = pneg %p170
        %s416 = smul.u32 2, %s22
        %p417 = scmp.lt.s32.totalorder %s416, 3
        %s418 = scalar_select %p417, %s416, 3
        %s419 = smul.addr %s418, 8
        %s420 = smul.addr %s419, 8
        %s421 = scalar_lea.vmem %s6, %s420
        %p422 = pneg %p199
        %p423 = pneg %p196
        %s424 = smul.u32 2, %s22
        %p425 = scmp.lt.s32.totalorder %s424, 3
        %s426 = scalar_select %p425, %s424, 3
        %s427 = smul.addr %s426, 2
        %s428 = scalar_lea.vmem %s7, %s427
        %p429 = pneg %p225
        %p430 = pneg %p222
        %p431 = pneg %p251
        %p432 = pneg %p248
        %s433 = smul.u32 2, %s22
        %p434 = scmp.lt.s32.totalorder %s433, 3
        %s435 = scalar_select %p434, %s433, 3
        %s436 = smul.addr %s435, 8
        %s437 = scalar_lea.vmem %s8, %s436
        %s438 = smul.u32 2, %s22
        %p439 = scmp.lt.s32.totalorder %s438, 3
        %s440 = scalar_select %p439, %s438, 3
        %s441 = smul.addr %s440, 8
        %s442 = scalar_lea.vmem %s0, %s441
        %s443 = smul.u32 2, %s22
        %s444 = smul.u32 2, %s22
        %p445 = scmp.lt.s32.totalorder %s444, 3
        %s446 = scalar_select %p445, %s444, 3
        %s447 = smul.addr %s446, 8
        %s448 = scalar_lea.vmem %s1, %s447
        %s449 = smul.u32 2, %s22
        %s450 = smul.u32 2, %s22
        %s451 = smul.u32 2, %s22
        %p452 = scmp.lt.s32.totalorder %s451, 3
        %s453 = scalar_select %p452, %s451, 3
        %s454 = smul.addr %s453, 2
        %s455 = scalar_lea.vmem %s3, %s454
        %s456 = smul.u32 2, %s22
        %s457 = smul.u32 2, %s22
        %p458 = scmp.lt.s32.totalorder %s457, 3
        %s459 = scalar_select %p458, %s457, 3
        %s460 = smul.addr %s459, 8
        %s461 = smul.addr %s460, 8
        %s462 = scalar_lea.vmem %s4, %s461
        %s463 = smul.u32 2, %s22
        %s464 = smul.u32 2, %s22
        %p465 = scmp.lt.s32.totalorder %s464, 3
        %s466 = scalar_select %p465, %s464, 3
        %s467 = smul.addr %s466, 2
        %s468 = scalar_lea.vmem %s5, %s467
        %s469 = smul.u32 2, %s22
        %s470 = smul.u32 2, %s22
        %p471 = scmp.lt.s32.totalorder %s470, 3
        %s472 = scalar_select %p471, %s470, 3
        %s473 = smul.addr %s472, 8
        %s474 = smul.addr %s473, 8
        %s475 = scalar_lea.vmem %s6, %s474
        %s476 = smul.u32 2, %s22
        %s477 = smul.u32 2, %s22
        %p478 = scmp.lt.s32.totalorder %s477, 3
        %s479 = scalar_select %p478, %s477, 3
        %s480 = smul.addr %s479, 2
        %s481 = scalar_lea.vmem %s7, %s480
        %s482 = smul.u32 2, %s22
        %s483 = smul.u32 2, %s22
        %p484 = scmp.lt.s32.totalorder %s483, 3
        %s485 = scalar_select %p484, %s483, 3
        %s486 = smul.addr %s485, 8
        %s487 = scalar_lea.vmem %s8, %s486
        %s488 = smul.u32 2, %s22
        %v489 = vld [vmem:[%s442] sm:$0xff]
        %v490 = vld [vmem:[%s442 + $0x8] sm:$0xff]
        %v491 = vld [vmem:[%s448] sm:$0xff]
        %v492 = vld [vmem:[%s448 + $0x8] sm:$0xff]
        %495 = vrot.lane.b32.xlu0 %v491, 12
        %v496 = vpop.permute.xlu0 %495
        %497 = vrot.lane.b32.xlu0 %v492, 12
        %v498 = vpop.permute.xlu0 %497
        %vm501 = vcmask 97280
        %v502 = vsel %vm501, %v489, %v496
        %v503 = vsel %vm501, %v490, %v498
        %v504 = vld [vmem:[%s368] sm:$0xff]
        %v505 = vld [vmem:[%s368 + $0x8] sm:$0xff]
        %v506 = vld [vmem:[%s368 + $0x10] sm:$0xff]
        %v507 = vld [vmem:[%s368 + $0x18] sm:$0xff]
        %v508 = vld [vmem:[%s368 + $0x20] sm:$0xff]
        %v509 = vld [vmem:[%s368 + $0x28] sm:$0xff]
        %v510 = vld [vmem:[%s368 + $0x30] sm:$0xff]
        %v511 = vld [vmem:[%s368 + $0x38] sm:$0xff]
        %v512 = vld [vmem:[%s455] sm:$0x1]
        %v513 = vld [vmem:[%s455 + $0x1] sm:$0x1]
        %v514 = vld [vmem:[%s455 + $0x2] sm:$0x1]
        %v515 = vld [vmem:[%s455 + $0x3] sm:$0x1]
        %v518 = vlaneseq
        %v519 = vshrl.u32 %v518, 7
        %v520 = vsub.s32 0, %v519
        %v521 = vrot.slane %v512, %v520
        %v522 = vlaneseq
        %v523 = vshrl.u32 %v522, 7
        %v524 = vsub.s32 0, %v523
        %v525 = vrot.slane %v514, %v524
        %vm528 = vcmask 130048
        %v530 = vsel %vm528, %v502, 0
        %532 = vmatprep.subr.mxu0 0.0
        %533 = vmatpush1.msra.mxu0 %v504
        %534 = vmatprep.subr.mxu0 0.0
        %535 = vmatpush1.msra.mxu0 %v505
        %536 = vmatprep.subr.mxu0 0.0
        %537 = vmatpush1.msra.mxu0 0.0
        %538 = vmatprep.subr.mxu0 0.0
        %539 = vmatpush1.msra.mxu0 0.0
        %540 = vmatprep.subr.mxu0 0.0
        %541 = vmatpush1.msra.mxu0 0.0
        %542 = vmatprep.subr.mxu0 0.0
        %543 = vmatpush1.msra.mxu0 0.0
        %544 = vmatprep.subr.mxu0 0.0
        %545 = vmatpush1.msra.mxu0 0.0
        %546 = vmatprep.subr.mxu0 0.0
        %547 = vmatpush1.msra.mxu0 0.0
        %548 = vmatprep.subr.mxu0 0.0
        %549 = vmatpush1.msra.mxu0 0.0
        %550 = vmatprep.subr.mxu0 0.0
        %551 = vmatpush1.msra.mxu0 0.0
        %552 = vmatprep.subr.mxu0 0.0
        %553 = vmatpush1.msra.mxu0 0.0
        %554 = vmatprep.subr.mxu0 0.0
        %555 = vmatpush1.msra.mxu0 0.0
        %556 = vmatprep.subr.mxu0 0.0
        %557 = vmatpush1.msra.mxu0 0.0
        %558 = vmatprep.subr.mxu0 0.0
        %559 = vmatpush1.msra.mxu0 0.0
        %560 = vmatprep.subr.mxu0 0.0
        %561 = vmatpush1.msra.mxu0 0.0
        %562 = vmatprep.subr.mxu0 0.0
        %563 = vmatpush1.msra.mxu0 0.0
        %564 = vmatprep.subr.mxu0 0.0
        %565 = vmatpush1.msra.mxu0 0.0
        %566 = vmatprep.subr.mxu0 0.0
        %567 = vmatpush1.msra.mxu0 0.0
        %568 = vmatprep.subr.mxu0 0.0
        %569 = vmatpush1.msra.mxu0 0.0
        %570 = vmatprep.subr.mxu0 0.0
        %571 = vmatpush1.msra.mxu0 0.0
        %572 = vmatprep.subr.mxu0 0.0
        %573 = vmatpush1.msra.mxu0 0.0
        %574 = vmatprep.subr.mxu0 0.0
        %575 = vmatpush1.msra.mxu0 0.0
        %576 = vmatprep.subr.mxu0 0.0
        %577 = vmatpush1.msra.mxu0 0.0
        %578 = vmatprep.subr.mxu0 0.0
        %579 = vmatpush1.msra.mxu0 0.0
        %580 = vmatprep.subr.mxu0 0.0
        %581 = vmatpush1.msra.mxu0 0.0
        %582 = vmatprep.subr.mxu0 0.0
        %583 = vmatpush1.msra.mxu0 0.0
        %584 = vmatprep.subr.mxu0 0.0
        %585 = vmatpush1.msra.mxu0 0.0
        %586 = vmatprep.subr.mxu0 0.0
        %587 = vmatpush1.msra.mxu0 0.0
        %588 = vmatprep.subr.mxu0 0.0
        %589 = vmatpush1.msra.mxu0 0.0
        %590 = vmatprep.subr.mxu0 0.0
        %591 = vmatpush1.msra.mxu0 0.0
        %592 = vmatprep.subr.mxu0 0.0
        %593 = vmatpush1.msra.mxu0 0.0
        %594 = vmatprep.subr.mxu0 0.0
        %595 = vmatpush1.msra.mxu0 0.0
        %596 = vmatprep.mubr.f32.mxu0 0.0
        %597 = vmatmul.mubr.f32.gmra.mrb[0].mxu0 %v530
        %v598 = vpop.f32.mrb[0].mxu0
        %v599 = vadd.f32 %v521, %v598
        %v600 = vpop.f32.mrb[0].mxu0
        %601 = vdwg.mxu0
        %v603 = vsel %vm528, %v503, 0
        %605 = vmatprep.subr.mxu0 0.0
        %606 = vmatpush1.msra.mxu0 %v508
        %607 = vmatprep.subr.mxu0 0.0
        %608 = vmatpush1.msra.mxu0 %v509
        %609 = vmatprep.subr.mxu0 0.0
        %610 = vmatpush1.msra.mxu0 0.0
        %611 = vmatprep.subr.mxu0 0.0
        %612 = vmatpush1.msra.mxu0 0.0
        %613 = vmatprep.subr.mxu0 0.0
        %614 = vmatpush1.msra.mxu0 0.0
        %615 = vmatprep.subr.mxu0 0.0
        %616 = vmatpush1.msra.mxu0 0.0
        %617 = vmatprep.subr.mxu0 0.0
        %618 = vmatpush1.msra.mxu0 0.0
        %619 = vmatprep.subr.mxu0 0.0
        %620 = vmatpush1.msra.mxu0 0.0
        %621 = vmatprep.subr.mxu0 0.0
        %622 = vmatpush1.msra.mxu0 0.0
        %623 = vmatprep.subr.mxu0 0.0
        %624 = vmatpush1.msra.mxu0 0.0
        %625 = vmatprep.subr.mxu0 0.0
        %626 = vmatpush1.msra.mxu0 0.0
        %627 = vmatprep.subr.mxu0 0.0
        %628 = vmatpush1.msra.mxu0 0.0
        %629 = vmatprep.subr.mxu0 0.0
        %630 = vmatpush1.msra.mxu0 0.0
        %631 = vmatprep.subr.mxu0 0.0
        %632 = vmatpush1.msra.mxu0 0.0
        %633 = vmatprep.subr.mxu0 0.0
        %634 = vmatpush1.msra.mxu0 0.0
        %635 = vmatprep.subr.mxu0 0.0
        %636 = vmatpush1.msra.mxu0 0.0
        %637 = vmatprep.subr.mxu0 0.0
        %638 = vmatpush1.msra.mxu0 0.0
        %639 = vmatprep.subr.mxu0 0.0
        %640 = vmatpush1.msra.mxu0 0.0
        %641 = vmatprep.subr.mxu0 0.0
        %642 = vmatpush1.msra.mxu0 0.0
        %643 = vmatprep.subr.mxu0 0.0
        %644 = vmatpush1.msra.mxu0 0.0
        %645 = vmatprep.subr.mxu0 0.0
        %646 = vmatpush1.msra.mxu0 0.0
        %647 = vmatprep.subr.mxu0 0.0
        %648 = vmatpush1.msra.mxu0 0.0
        %649 = vmatprep.subr.mxu0 0.0
        %650 = vmatpush1.msra.mxu0 0.0
        %651 = vmatprep.subr.mxu0 0.0
        %652 = vmatpush1.msra.mxu0 0.0
        %653 = vmatprep.subr.mxu0 0.0
        %654 = vmatpush1.msra.mxu0 0.0
        %655 = vmatprep.subr.mxu0 0.0
        %656 = vmatpush1.msra.mxu0 0.0
        %657 = vmatprep.subr.mxu0 0.0
        %658 = vmatpush1.msra.mxu0 0.0
        %659 = vmatprep.subr.mxu0 0.0
        %660 = vmatpush1.msra.mxu0 0.0
        %661 = vmatprep.subr.mxu0 0.0
        %662 = vmatpush1.msra.mxu0 0.0
        %663 = vmatprep.subr.mxu0 0.0
        %664 = vmatpush1.msra.mxu0 0.0
        %665 = vmatprep.subr.mxu0 0.0
        %666 = vmatpush1.msra.mxu0 0.0
        %667 = vmatprep.subr.mxu0 0.0
        %668 = vmatpush1.msra.mxu0 0.0
        %669 = vmatprep.mubr.f32.mxu0 0.0
        %670 = vmatmul.mubr.f32.gmra.mrb[0].mxu0 %v603
        %v671 = vpop.f32.mrb[0].mxu0
        %v672 = vadd.f32 %v525, %v671
        %v673 = vpop.f32.mrb[0].mxu0
        %674 = vdwg.mxu0
        %v677 = vlaneseq
        %v678 = vshrl.u32 %v677, 7
        %v679 = vsub.s32 0, %v678
        %v680 = vrot.slane %v513, %v679
        %v681 = vlaneseq
        %v682 = vshrl.u32 %v681, 7
        %v683 = vsub.s32 0, %v682
        %v684 = vrot.slane %v515, %v683
        %687 = vmatprep.subr.mxu0 0.0
        %688 = vmatpush1.msra.mxu0 %v506
        %689 = vmatprep.subr.mxu0 0.0
        %690 = vmatpush1.msra.mxu0 %v507
        %691 = vmatprep.subr.mxu0 0.0
        %692 = vmatpush1.msra.mxu0 0.0
        %693 = vmatprep.subr.mxu0 0.0
        %694 = vmatpush1.msra.mxu0 0.0
        %695 = vmatprep.subr.mxu0 0.0
        %696 = vmatpush1.msra.mxu0 0.0
        %697 = vmatprep.subr.mxu0 0.0
        %698 = vmatpush1.msra.mxu0 0.0
        %699 = vmatprep.subr.mxu0 0.0
        %700 = vmatpush1.msra.mxu0 0.0
        %701 = vmatprep.subr.mxu0 0.0
        %702 = vmatpush1.msra.mxu0 0.0
        %703 = vmatprep.subr.mxu0 0.0
        %704 = vmatpush1.msra.mxu0 0.0
        %705 = vmatprep.subr.mxu0 0.0
        %706 = vmatpush1.msra.mxu0 0.0
        %707 = vmatprep.subr.mxu0 0.0
        %708 = vmatpush1.msra.mxu0 0.0
        %709 = vmatprep.subr.mxu0 0.0
        %710 = vmatpush1.msra.mxu0 0.0
        %711 = vmatprep.subr.mxu0 0.0
        %712 = vmatpush1.msra.mxu0 0.0
        %713 = vmatprep.subr.mxu0 0.0
        %714 = vmatpush1.msra.mxu0 0.0
        %715 = vmatprep.subr.mxu0 0.0
        %716 = vmatpush1.msra.mxu0 0.0
        %717 = vmatprep.subr.mxu0 0.0
        %718 = vmatpush1.msra.mxu0 0.0
        %719 = vmatprep.subr.mxu0 0.0
        %720 = vmatpush1.msra.mxu0 0.0
        %721 = vmatprep.subr.mxu0 0.0
        %722 = vmatpush1.msra.mxu0 0.0
        %723 = vmatprep.subr.mxu0 0.0
        %724 = vmatpush1.msra.mxu0 0.0
        %725 = vmatprep.subr.mxu0 0.0
        %726 = vmatpush1.msra.mxu0 0.0
        %727 = vmatprep.subr.mxu0 0.0
        %728 = vmatpush1.msra.mxu0 0.0
        %729 = vmatprep.subr.mxu0 0.0
        %730 = vmatpush1.msra.mxu0 0.0
        %731 = vmatprep.subr.mxu0 0.0
        %732 = vmatpush1.msra.mxu0 0.0
        %733 = vmatprep.subr.mxu0 0.0
        %734 = vmatpush1.msra.mxu0 0.0
        %735 = vmatprep.subr.mxu0 0.0
        %736 = vmatpush1.msra.mxu0 0.0
        %737 = vmatprep.subr.mxu0 0.0
        %738 = vmatpush1.msra.mxu0 0.0
        %739 = vmatprep.subr.mxu0 0.0
        %740 = vmatpush1.msra.mxu0 0.0
        %741 = vmatprep.subr.mxu0 0.0
        %742 = vmatpush1.msra.mxu0 0.0
        %743 = vmatprep.subr.mxu0 0.0
        %744 = vmatpush1.msra.mxu0 0.0
        %745 = vmatprep.subr.mxu0 0.0
        %746 = vmatpush1.msra.mxu0 0.0
        %747 = vmatprep.subr.mxu0 0.0
        %748 = vmatpush1.msra.mxu0 0.0
        %749 = vmatprep.subr.mxu0 0.0
        %750 = vmatpush1.msra.mxu0 0.0
        %751 = vmatprep.mubr.f32.mxu0 0.0
        %752 = vmatmul.mubr.f32.gmra.mrb[0].mxu0 %v530
        %v753 = vpop.f32.mrb[0].mxu0
        %v754 = vadd.f32 %v680, %v753
        %v755 = vpop.f32.mrb[0].mxu0
        %756 = vdwg.mxu0
        %757 = vmatprep.subr.mxu0 0.0
        %758 = vmatpush1.msra.mxu0 %v510
        %759 = vmatprep.subr.mxu0 0.0
        %760 = vmatpush1.msra.mxu0 %v511
        %761 = vmatprep.subr.mxu0 0.0
        %762 = vmatpush1.msra.mxu0 0.0
        %763 = vmatprep.subr.mxu0 0.0
        %764 = vmatpush1.msra.mxu0 0.0
        %765 = vmatprep.subr.mxu0 0.0
        %766 = vmatpush1.msra.mxu0 0.0
        %767 = vmatprep.subr.mxu0 0.0
        %768 = vmatpush1.msra.mxu0 0.0
        %769 = vmatprep.subr.mxu0 0.0
        %770 = vmatpush1.msra.mxu0 0.0
        %771 = vmatprep.subr.mxu0 0.0
        %772 = vmatpush1.msra.mxu0 0.0
        %773 = vmatprep.subr.mxu0 0.0
        %774 = vmatpush1.msra.mxu0 0.0
        %775 = vmatprep.subr.mxu0 0.0
        %776 = vmatpush1.msra.mxu0 0.0
        %777 = vmatprep.subr.mxu0 0.0
        %778 = vmatpush1.msra.mxu0 0.0
        %779 = vmatprep.subr.mxu0 0.0
        %780 = vmatpush1.msra.mxu0 0.0
        %781 = vmatprep.subr.mxu0 0.0
        %782 = vmatpush1.msra.mxu0 0.0
        %783 = vmatprep.subr.mxu0 0.0
        %784 = vmatpush1.msra.mxu0 0.0
        %785 = vmatprep.subr.mxu0 0.0
        %786 = vmatpush1.msra.mxu0 0.0
        %787 = vmatprep.subr.mxu0 0.0
        %788 = vmatpush1.msra.mxu0 0.0
        %789 = vmatprep.subr.mxu0 0.0
        %790 = vmatpush1.msra.mxu0 0.0
        %791 = vmatprep.subr.mxu0 0.0
        %792 = vmatpush1.msra.mxu0 0.0
        %793 = vmatprep.subr.mxu0 0.0
        %794 = vmatpush1.msra.mxu0 0.0
        %795 = vmatprep.subr.mxu0 0.0
        %796 = vmatpush1.msra.mxu0 0.0
        %797 = vmatprep.subr.mxu0 0.0
        %798 = vmatpush1.msra.mxu0 0.0
        %799 = vmatprep.subr.mxu0 0.0
        %800 = vmatpush1.msra.mxu0 0.0
        %801 = vmatprep.subr.mxu0 0.0
        %802 = vmatpush1.msra.mxu0 0.0
        %803 = vmatprep.subr.mxu0 0.0
        %804 = vmatpush1.msra.mxu0 0.0
        %805 = vmatprep.subr.mxu0 0.0
        %806 = vmatpush1.msra.mxu0 0.0
        %807 = vmatprep.subr.mxu0 0.0
        %808 = vmatpush1.msra.mxu0 0.0
        %809 = vmatprep.subr.mxu0 0.0
        %810 = vmatpush1.msra.mxu0 0.0
        %811 = vmatprep.subr.mxu0 0.0
        %812 = vmatpush1.msra.mxu0 0.0
        %813 = vmatprep.subr.mxu0 0.0
        %814 = vmatpush1.msra.mxu0 0.0
        %815 = vmatprep.subr.mxu0 0.0
        %816 = vmatpush1.msra.mxu0 0.0
        %817 = vmatprep.subr.mxu0 0.0
        %818 = vmatpush1.msra.mxu0 0.0
        %819 = vmatprep.subr.mxu0 0.0
        %820 = vmatpush1.msra.mxu0 0.0
        %821 = vmatprep.mubr.f32.mxu0 0.0
        %822 = vmatmul.mubr.f32.gmra.mrb[0].mxu0 %v603
        %v823 = vpop.f32.mrb[0].mxu0
        %v824 = vadd.f32 %v684, %v823
        %v825 = vpop.f32.mrb[0].mxu0
        %826 = vdwg.mxu0
        %v827 = vmax.f32 %v599, 0.0
        %v828 = vmax.f32 %v672, 0.0
        %v829 = vmax.f32 %v754, 0.0
        %v830 = vmax.f32 %v824, 0.0
        %v831 = vld [vmem:[%s462] sm:$0xff]
        %v832 = vld [vmem:[%s462 + $0x8] sm:$0xff]
        %v833 = vld [vmem:[%s462 + $0x10] sm:$0xff]
        %v834 = vld [vmem:[%s462 + $0x18] sm:$0xff]
        %v835 = vld [vmem:[%s462 + $0x20] sm:$0xff]
        %v836 = vld [vmem:[%s462 + $0x28] sm:$0xff]
        %v837 = vld [vmem:[%s462 + $0x30] sm:$0xff]
        %v838 = vld [vmem:[%s462 + $0x38] sm:$0xff]
        %v839 = vld [vmem:[%s462 + $0x40] sm:$0xff]
        %v840 = vld [vmem:[%s462 + $0x48] sm:$0xff]
        %v841 = vld [vmem:[%s462 + $0x50] sm:$0xff]
        %v842 = vld [vmem:[%s462 + $0x58] sm:$0xff]
        %v843 = vld [vmem:[%s462 + $0x60] sm:$0xff]
        %v844 = vld [vmem:[%s462 + $0x68] sm:$0xff]
        %v845 = vld [vmem:[%s462 + $0x70] sm:$0xff]
        %v846 = vld [vmem:[%s462 + $0x78] sm:$0xff]
        %v847 = vld [vmem:[%s468] sm:$0x1]
        %v848 = vld [vmem:[%s468 + $0x1] sm:$0x1]
        %v849 = vld [vmem:[%s468 + $0x2] sm:$0x1]
        %v850 = vld [vmem:[%s468 + $0x3] sm:$0x1]
        %v853 = vlaneseq
        %v854 = vshrl.u32 %v853, 7
        %v855 = vsub.s32 0, %v854
        %v856 = vrot.slane %v847, %v855
        %v857 = vlaneseq
        %v858 = vshrl.u32 %v857, 7
        %v859 = vsub.s32 0, %v858
        %v860 = vrot.slane %v849, %v859
        %vm863 = vcmask 261120
        %v865 = vsel %vm863, %v827, 0
        %867 = vmatprep.subr.mxu0 0.0
        %868 = vmatpush1.msra.mxu0 %v831
        %869 = vmatprep.subr.mxu0 0.0
        %870 = vmatpush1.msra.mxu0 %v832
        %871 = vmatprep.subr.mxu0 0.0
        %872 = vmatpush1.msra.mxu0 %v833
        %873 = vmatprep.subr.mxu0 0.0
        %874 = vmatpush1.msra.mxu0 %v834
        %875 = vmatprep.subr.mxu0 0.0
        %876 = vmatpush1.msra.mxu0 0.0
        %877 = vmatprep.subr.mxu0 0.0
        %878 = vmatpush1.msra.mxu0 0.0
        %879 = vmatprep.subr.mxu0 0.0
        %880 = vmatpush1.msra.mxu0 0.0
        %881 = vmatprep.subr.mxu0 0.0
        %882 = vmatpush1.msra.mxu0 0.0
        %883 = vmatprep.subr.mxu0 0.0
        %884 = vmatpush1.msra.mxu0 0.0
        %885 = vmatprep.subr.mxu0 0.0
        %886 = vmatpush1.msra.mxu0 0.0
        %887 = vmatprep.subr.mxu0 0.0
        %888 = vmatpush1.msra.mxu0 0.0
        %889 = vmatprep.subr.mxu0 0.0
        %890 = vmatpush1.msra.mxu0 0.0
        %891 = vmatprep.subr.mxu0 0.0
        %892 = vmatpush1.msra.mxu0 0.0
        %893 = vmatprep.subr.mxu0 0.0
        %894 = vmatpush1.msra.mxu0 0.0
        %895 = vmatprep.subr.mxu0 0.0
        %896 = vmatpush1.msra.mxu0 0.0
        %897 = vmatprep.subr.mxu0 0.0
        %898 = vmatpush1.msra.mxu0 0.0
        %899 = vmatprep.subr.mxu0 0.0
        %900 = vmatpush1.msra.mxu0 0.0
        %901 = vmatprep.subr.mxu0 0.0
        %902 = vmatpush1.msra.mxu0 0.0
        %903 = vmatprep.subr.mxu0 0.0
        %904 = vmatpush1.msra.mxu0 0.0
        %905 = vmatprep.subr.mxu0 0.0
        %906 = vmatpush1.msra.mxu0 0.0
        %907 = vmatprep.subr.mxu0 0.0
        %908 = vmatpush1.msra.mxu0 0.0
        %909 = vmatprep.subr.mxu0 0.0
        %910 = vmatpush1.msra.mxu0 0.0
        %911 = vmatprep.subr.mxu0 0.0
        %912 = vmatpush1.msra.mxu0 0.0
        %913 = vmatprep.subr.mxu0 0.0
        %914 = vmatpush1.msra.mxu0 0.0
        %915 = vmatprep.subr.mxu0 0.0
        %916 = vmatpush1.msra.mxu0 0.0
        %917 = vmatprep.subr.mxu0 0.0
        %918 = vmatpush1.msra.mxu0 0.0
        %919 = vmatprep.subr.mxu0 0.0
        %920 = vmatpush1.msra.mxu0 0.0
        %921 = vmatprep.subr.mxu0 0.0
        %922 = vmatpush1.msra.mxu0 0.0
        %923 = vmatprep.subr.mxu0 0.0
        %924 = vmatpush1.msra.mxu0 0.0
        %925 = vmatprep.subr.mxu0 0.0
        %926 = vmatpush1.msra.mxu0 0.0
        %927 = vmatprep.subr.mxu0 0.0
        %928 = vmatpush1.msra.mxu0 0.0
        %929 = vmatprep.subr.mxu0 0.0
        %930 = vmatpush1.msra.mxu0 0.0
        %931 = vmatprep.mubr.f32.mxu0 0.0
        %932 = vmatmul.mubr.f32.gmra.mrb[0].mxu0 %v865
        %v933 = vpop.f32.mrb[0].mxu0
        %v934 = vadd.f32 %v856, %v933
        %v935 = vpop.f32.mrb[0].mxu0
        %936 = vdwg.mxu0
        %v938 = vsel %vm863, %v828, 0
        %940 = vmatprep.subr.mxu0 0.0
        %941 = vmatpush1.msra.mxu0 %v839
        %942 = vmatprep.subr.mxu0 0.0
        %943 = vmatpush1.msra.mxu0 %v840
        %944 = vmatprep.subr.mxu0 0.0
        %945 = vmatpush1.msra.mxu0 %v841
        %946 = vmatprep.subr.mxu0 0.0
        %947 = vmatpush1.msra.mxu0 %v842
        %948 = vmatprep.subr.mxu0 0.0
        %949 = vmatpush1.msra.mxu0 0.0
        %950 = vmatprep.subr.mxu0 0.0
        %951 = vmatpush1.msra.mxu0 0.0
        %952 = vmatprep.subr.mxu0 0.0
        %953 = vmatpush1.msra.mxu0 0.0
        %954 = vmatprep.subr.mxu0 0.0
        %955 = vmatpush1.msra.mxu0 0.0
        %956 = vmatprep.subr.mxu0 0.0
        %957 = vmatpush1.msra.mxu0 0.0
        %958 = vmatprep.subr.mxu0 0.0
        %959 = vmatpush1.msra.mxu0 0.0
        %960 = vmatprep.subr.mxu0 0.0
        %961 = vmatpush1.msra.mxu0 0.0
        %962 = vmatprep.subr.mxu0 0.0
        %963 = vmatpush1.msra.mxu0 0.0
        %964 = vmatprep.subr.mxu0 0.0
        %965 = vmatpush1.msra.mxu0 0.0
        %966 = vmatprep.subr.mxu0 0.0
        %967 = vmatpush1.msra.mxu0 0.0
        %968 = vmatprep.subr.mxu0 0.0
        %969 = vmatpush1.msra.mxu0 0.0
        %970 = vmatprep.subr.mxu0 0.0
        %971 = vmatpush1.msra.mxu0 0.0
        %972 = vmatprep.subr.mxu0 0.0
        %973 = vmatpush1.msra.mxu0 0.0
        %974 = vmatprep.subr.mxu0 0.0
        %975 = vmatpush1.msra.mxu0 0.0
        %976 = vmatprep.subr.mxu0 0.0
        %977 = vmatpush1.msra.mxu0 0.0
        %978 = vmatprep.subr.mxu0 0.0
        %979 = vmatpush1.msra.mxu0 0.0
        %980 = vmatprep.subr.mxu0 0.0
        %981 = vmatpush1.msra.mxu0 0.0
        %982 = vmatprep.subr.mxu0 0.0
        %983 = vmatpush1.msra.mxu0 0.0
        %984 = vmatprep.subr.mxu0 0.0
        %985 = vmatpush1.msra.mxu0 0.0
        %986 = vmatprep.subr.mxu0 0.0
        %987 = vmatpush1.msra.mxu0 0.0
        %988 = vmatprep.subr.mxu0 0.0
        %989 = vmatpush1.msra.mxu0 0.0
        %990 = vmatprep.subr.mxu0 0.0
        %991 = vmatpush1.msra.mxu0 0.0
        %992 = vmatprep.subr.mxu0 0.0
        %993 = vmatpush1.msra.mxu0 0.0
        %994 = vmatprep.subr.mxu0 0.0
        %995 = vmatpush1.msra.mxu0 0.0
        %996 = vmatprep.subr.mxu0 0.0
        %997 = vmatpush1.msra.mxu0 0.0
        %998 = vmatprep.subr.mxu0 0.0
        %999 = vmatpush1.msra.mxu0 0.0
        %1000 = vmatprep.subr.mxu0 0.0
        %1001 = vmatpush1.msra.mxu0 0.0
        %1002 = vmatprep.subr.mxu0 0.0
        %1003 = vmatpush1.msra.mxu0 0.0
        %1004 = vmatprep.mubr.f32.mxu0 0.0
        %1005 = vmatmul.mubr.f32.gmra.mrb[0].mxu0 %v938
        %v1006 = vpop.f32.mrb[0].mxu0
        %v1007 = vadd.f32 %v860, %v1006
        %v1008 = vpop.f32.mrb[0].mxu0
        %1009 = vdwg.mxu0
        %v1012 = vlaneseq
        %v1013 = vshrl.u32 %v1012, 7
        %v1014 = vsub.s32 0, %v1013
        %v1015 = vrot.slane %v848, %v1014
        %v1016 = vlaneseq
        %v1017 = vshrl.u32 %v1016, 7
        %v1018 = vsub.s32 0, %v1017
        %v1019 = vrot.slane %v850, %v1018
        %v1023 = vsel %vm863, %v829, 0
        %1025 = vmatprep.subr.mxu0 0.0
        %1026 = vmatpush1.msra.mxu0 %v835
        %1027 = vmatprep.subr.mxu0 0.0
        %1028 = vmatpush1.msra.mxu0 %v836
        %1029 = vmatprep.subr.mxu0 0.0
        %1030 = vmatpush1.msra.mxu0 %v837
        %1031 = vmatprep.subr.mxu0 0.0
        %1032 = vmatpush1.msra.mxu0 %v838
        %1033 = vmatprep.subr.mxu0 0.0
        %1034 = vmatpush1.msra.mxu0 0.0
        %1035 = vmatprep.subr.mxu0 0.0
        %1036 = vmatpush1.msra.mxu0 0.0
        %1037 = vmatprep.subr.mxu0 0.0
        %1038 = vmatpush1.msra.mxu0 0.0
        %1039 = vmatprep.subr.mxu0 0.0
        %1040 = vmatpush1.msra.mxu0 0.0
        %1041 = vmatprep.subr.mxu0 0.0
        %1042 = vmatpush1.msra.mxu0 0.0
        %1043 = vmatprep.subr.mxu0 0.0
        %1044 = vmatpush1.msra.mxu0 0.0
        %1045 = vmatprep.subr.mxu0 0.0
        %1046 = vmatpush1.msra.mxu0 0.0
        %1047 = vmatprep.subr.mxu0 0.0
        %1048 = vmatpush1.msra.mxu0 0.0
        %1049 = vmatprep.subr.mxu0 0.0
        %1050 = vmatpush1.msra.mxu0 0.0
        %1051 = vmatprep.subr.mxu0 0.0
        %1052 = vmatpush1.msra.mxu0 0.0
        %1053 = vmatprep.subr.mxu0 0.0
        %1054 = vmatpush1.msra.mxu0 0.0
        %1055 = vmatprep.subr.mxu0 0.0
        %1056 = vmatpush1.msra.mxu0 0.0
        %1057 = vmatprep.subr.mxu0 0.0
        %1058 = vmatpush1.msra.mxu0 0.0
        %1059 = vmatprep.subr.mxu0 0.0
        %1060 = vmatpush1.msra.mxu0 0.0
        %1061 = vmatprep.subr.mxu0 0.0
        %1062 = vmatpush1.msra.mxu0 0.0
        %1063 = vmatprep.subr.mxu0 0.0
        %1064 = vmatpush1.msra.mxu0 0.0
        %1065 = vmatprep.subr.mxu0 0.0
        %1066 = vmatpush1.msra.mxu0 0.0
        %1067 = vmatprep.subr.mxu0 0.0
        %1068 = vmatpush1.msra.mxu0 0.0
        %1069 = vmatprep.subr.mxu0 0.0
        %1070 = vmatpush1.msra.mxu0 0.0
        %1071 = vmatprep.subr.mxu0 0.0
        %1072 = vmatpush1.msra.mxu0 0.0
        %1073 = vmatprep.subr.mxu0 0.0
        %1074 = vmatpush1.msra.mxu0 0.0
        %1075 = vmatprep.subr.mxu0 0.0
        %1076 = vmatpush1.msra.mxu0 0.0
        %1077 = vmatprep.subr.mxu0 0.0
        %1078 = vmatpush1.msra.mxu0 0.0
        %1079 = vmatprep.subr.mxu0 0.0
        %1080 = vmatpush1.msra.mxu0 0.0
        %1081 = vmatprep.subr.mxu0 0.0
        %1082 = vmatpush1.msra.mxu0 0.0
        %1083 = vmatprep.subr.mxu0 0.0
        %1084 = vmatpush1.msra.mxu0 0.0
        %1085 = vmatprep.subr.mxu0 0.0
        %1086 = vmatpush1.msra.mxu0 0.0
        %1087 = vmatprep.subr.mxu0 0.0
        %1088 = vmatpush1.msra.mxu0 0.0
        %1089 = vmatprep.mubr.f32.mxu0 0.0
        %1090 = vmatmul.mubr.f32.gmra.mrb[0].mxu0 %v1023
        %v1091 = vpop.f32.mrb[0].mxu0
        %v1092 = vadd.f32 %v1015, %v1091
        %v1093 = vpop.f32.mrb[0].mxu0
        %1094 = vdwg.mxu0
        %v1096 = vsel %vm863, %v830, 0
        %1098 = vmatprep.subr.mxu0 0.0
        %1099 = vmatpush1.msra.mxu0 %v843
        %1100 = vmatprep.subr.mxu0 0.0
        %1101 = vmatpush1.msra.mxu0 %v844
        %1102 = vmatprep.subr.mxu0 0.0
        %1103 = vmatpush1.msra.mxu0 %v845
        %1104 = vmatprep.subr.mxu0 0.0
        %1105 = vmatpush1.msra.mxu0 %v846
        %1106 = vmatprep.subr.mxu0 0.0
        %1107 = vmatpush1.msra.mxu0 0.0
        %1108 = vmatprep.subr.mxu0 0.0
        %1109 = vmatpush1.msra.mxu0 0.0
        %1110 = vmatprep.subr.mxu0 0.0
        %1111 = vmatpush1.msra.mxu0 0.0
        %1112 = vmatprep.subr.mxu0 0.0
        %1113 = vmatpush1.msra.mxu0 0.0
        %1114 = vmatprep.subr.mxu0 0.0
        %1115 = vmatpush1.msra.mxu0 0.0
        %1116 = vmatprep.subr.mxu0 0.0
        %1117 = vmatpush1.msra.mxu0 0.0
        %1118 = vmatprep.subr.mxu0 0.0
        %1119 = vmatpush1.msra.mxu0 0.0
        %1120 = vmatprep.subr.mxu0 0.0
        %1121 = vmatpush1.msra.mxu0 0.0
        %1122 = vmatprep.subr.mxu0 0.0
        %1123 = vmatpush1.msra.mxu0 0.0
        %1124 = vmatprep.subr.mxu0 0.0
        %1125 = vmatpush1.msra.mxu0 0.0
        %1126 = vmatprep.subr.mxu0 0.0
        %1127 = vmatpush1.msra.mxu0 0.0
        %1128 = vmatprep.subr.mxu0 0.0
        %1129 = vmatpush1.msra.mxu0 0.0
        %1130 = vmatprep.subr.mxu0 0.0
        %1131 = vmatpush1.msra.mxu0 0.0
        %1132 = vmatprep.subr.mxu0 0.0
        %1133 = vmatpush1.msra.mxu0 0.0
        %1134 = vmatprep.subr.mxu0 0.0
        %1135 = vmatpush1.msra.mxu0 0.0
        %1136 = vmatprep.subr.mxu0 0.0
        %1137 = vmatpush1.msra.mxu0 0.0
        %1138 = vmatprep.subr.mxu0 0.0
        %1139 = vmatpush1.msra.mxu0 0.0
        %1140 = vmatprep.subr.mxu0 0.0
        %1141 = vmatpush1.msra.mxu0 0.0
        %1142 = vmatprep.subr.mxu0 0.0
        %1143 = vmatpush1.msra.mxu0 0.0
        %1144 = vmatprep.subr.mxu0 0.0
        %1145 = vmatpush1.msra.mxu0 0.0
        %1146 = vmatprep.subr.mxu0 0.0
        %1147 = vmatpush1.msra.mxu0 0.0
        %1148 = vmatprep.subr.mxu0 0.0
        %1149 = vmatpush1.msra.mxu0 0.0
        %1150 = vmatprep.subr.mxu0 0.0
        %1151 = vmatpush1.msra.mxu0 0.0
        %1152 = vmatprep.subr.mxu0 0.0
        %1153 = vmatpush1.msra.mxu0 0.0
        %1154 = vmatprep.subr.mxu0 0.0
        %1155 = vmatpush1.msra.mxu0 0.0
        %1156 = vmatprep.subr.mxu0 0.0
        %1157 = vmatpush1.msra.mxu0 0.0
        %1158 = vmatprep.subr.mxu0 0.0
        %1159 = vmatpush1.msra.mxu0 0.0
        %1160 = vmatprep.subr.mxu0 0.0
        %1161 = vmatpush1.msra.mxu0 0.0
        %1162 = vmatprep.mubr.f32.mxu0 0.0
        %1163 = vmatmul.mubr.f32.gmra.mrb[0].mxu0 %v1096
        %v1164 = vpop.f32.mrb[0].mxu0
        %v1165 = vadd.f32 %v1019, %v1164
        %v1166 = vpop.f32.mrb[0].mxu0
        %1167 = vdwg.mxu0
        %v1168 = vmax.f32 %v934, 0.0
        %v1169 = vmax.f32 %v1007, 0.0
        %v1170 = vmax.f32 %v1092, 0.0
        %v1171 = vmax.f32 %v1165, 0.0
        %v1172 = vld [vmem:[%s475] sm:$0xff]
        %v1173 = vld [vmem:[%s475 + $0x8] sm:$0xff]
        %v1174 = vld [vmem:[%s475 + $0x10] sm:$0xff]
        %v1175 = vld [vmem:[%s475 + $0x18] sm:$0xff]
        %v1176 = vld [vmem:[%s475 + $0x20] sm:$0xff]
        %v1177 = vld [vmem:[%s475 + $0x28] sm:$0xff]
        %v1178 = vld [vmem:[%s475 + $0x30] sm:$0xff]
        %v1179 = vld [vmem:[%s475 + $0x38] sm:$0xff]
        %v1180 = vld [vmem:[%s475 + $0x40] sm:$0xff]
        %v1181 = vld [vmem:[%s475 + $0x48] sm:$0xff]
        %v1182 = vld [vmem:[%s475 + $0x50] sm:$0xff]
        %v1183 = vld [vmem:[%s475 + $0x58] sm:$0xff]
        %v1184 = vld [vmem:[%s475 + $0x60] sm:$0xff]
        %v1185 = vld [vmem:[%s475 + $0x68] sm:$0xff]
        %v1186 = vld [vmem:[%s475 + $0x70] sm:$0xff]
        %v1187 = vld [vmem:[%s475 + $0x78] sm:$0xff]
        %v1188 = vld [vmem:[%s481] sm:$0x1]
        %v1189 = vld [vmem:[%s481 + $0x1] sm:$0x1]
        %v1190 = vld [vmem:[%s481 + $0x2] sm:$0x1]
        %v1191 = vld [vmem:[%s481 + $0x3] sm:$0x1]
        %v1194 = vlaneseq
        %v1195 = vshrl.u32 %v1194, 7
        %v1196 = vsub.s32 0, %v1195
        %v1197 = vrot.slane %v1188, %v1196
        %v1198 = vlaneseq
        %v1199 = vshrl.u32 %v1198, 7
        %v1200 = vsub.s32 0, %v1199
        %v1201 = vrot.slane %v1190, %v1200
        %v1205 = vsel %vm863, %v1168, 0
        %1207 = vmatprep.subr.mxu0 0.0
        %1208 = vmatpush1.msra.mxu0 %v1172
        %1209 = vmatprep.subr.mxu0 0.0
        %1210 = vmatpush1.msra.mxu0 %v1173
        %1211 = vmatprep.subr.mxu0 0.0
        %1212 = vmatpush1.msra.mxu0 %v1174
        %1213 = vmatprep.subr.mxu0 0.0
        %1214 = vmatpush1.msra.mxu0 %v1175
        %1215 = vmatprep.subr.mxu0 0.0
        %1216 = vmatpush1.msra.mxu0 0.0
        %1217 = vmatprep.subr.mxu0 0.0
        %1218 = vmatpush1.msra.mxu0 0.0
        %1219 = vmatprep.subr.mxu0 0.0
        %1220 = vmatpush1.msra.mxu0 0.0
        %1221 = vmatprep.subr.mxu0 0.0
        %1222 = vmatpush1.msra.mxu0 0.0
        %1223 = vmatprep.subr.mxu0 0.0
        %1224 = vmatpush1.msra.mxu0 0.0
        %1225 = vmatprep.subr.mxu0 0.0
        %1226 = vmatpush1.msra.mxu0 0.0
        %1227 = vmatprep.subr.mxu0 0.0
        %1228 = vmatpush1.msra.mxu0 0.0
        %1229 = vmatprep.subr.mxu0 0.0
        %1230 = vmatpush1.msra.mxu0 0.0
        %1231 = vmatprep.subr.mxu0 0.0
        %1232 = vmatpush1.msra.mxu0 0.0
        %1233 = vmatprep.subr.mxu0 0.0
        %1234 = vmatpush1.msra.mxu0 0.0
        %1235 = vmatprep.subr.mxu0 0.0
        %1236 = vmatpush1.msra.mxu0 0.0
        %1237 = vmatprep.subr.mxu0 0.0
        %1238 = vmatpush1.msra.mxu0 0.0
        %1239 = vmatprep.subr.mxu0 0.0
        %1240 = vmatpush1.msra.mxu0 0.0
        %1241 = vmatprep.subr.mxu0 0.0
        %1242 = vmatpush1.msra.mxu0 0.0
        %1243 = vmatprep.subr.mxu0 0.0
        %1244 = vmatpush1.msra.mxu0 0.0
        %1245 = vmatprep.subr.mxu0 0.0
        %1246 = vmatpush1.msra.mxu0 0.0
        %1247 = vmatprep.subr.mxu0 0.0
        %1248 = vmatpush1.msra.mxu0 0.0
        %1249 = vmatprep.subr.mxu0 0.0
        %1250 = vmatpush1.msra.mxu0 0.0
        %1251 = vmatprep.subr.mxu0 0.0
        %1252 = vmatpush1.msra.mxu0 0.0
        %1253 = vmatprep.subr.mxu0 0.0
        %1254 = vmatpush1.msra.mxu0 0.0
        %1255 = vmatprep.subr.mxu0 0.0
        %1256 = vmatpush1.msra.mxu0 0.0
        %1257 = vmatprep.subr.mxu0 0.0
        %1258 = vmatpush1.msra.mxu0 0.0
        %1259 = vmatprep.subr.mxu0 0.0
        %1260 = vmatpush1.msra.mxu0 0.0
        %1261 = vmatprep.subr.mxu0 0.0
        %1262 = vmatpush1.msra.mxu0 0.0
        %1263 = vmatprep.subr.mxu0 0.0
        %1264 = vmatpush1.msra.mxu0 0.0
        %1265 = vmatprep.subr.mxu0 0.0
        %1266 = vmatpush1.msra.mxu0 0.0
        %1267 = vmatprep.subr.mxu0 0.0
        %1268 = vmatpush1.msra.mxu0 0.0
        %1269 = vmatprep.subr.mxu0 0.0
        %1270 = vmatpush1.msra.mxu0 0.0
        %1271 = vmatprep.mubr.f32.mxu0 0.0
        %1272 = vmatmul.mubr.f32.gmra.mrb[0].mxu0 %v1205
        %v1273 = vpop.f32.mrb[0].mxu0
        %v1274 = vadd.f32 %v1197, %v1273
        %v1275 = vpop.f32.mrb[0].mxu0
        %1276 = vdwg.mxu0
        %v1278 = vsel %vm863, %v1169, 0
        %1280 = vmatprep.subr.mxu0 0.0
        %1281 = vmatpush1.msra.mxu0 %v1180
        %1282 = vmatprep.subr.mxu0 0.0
        %1283 = vmatpush1.msra.mxu0 %v1181
        %1284 = vmatprep.subr.mxu0 0.0
        %1285 = vmatpush1.msra.mxu0 %v1182
        %1286 = vmatprep.subr.mxu0 0.0
        %1287 = vmatpush1.msra.mxu0 %v1183
        %1288 = vmatprep.subr.mxu0 0.0
        %1289 = vmatpush1.msra.mxu0 0.0
        %1290 = vmatprep.subr.mxu0 0.0
        %1291 = vmatpush1.msra.mxu0 0.0
        %1292 = vmatprep.subr.mxu0 0.0
        %1293 = vmatpush1.msra.mxu0 0.0
        %1294 = vmatprep.subr.mxu0 0.0
        %1295 = vmatpush1.msra.mxu0 0.0
        %1296 = vmatprep.subr.mxu0 0.0
        %1297 = vmatpush1.msra.mxu0 0.0
        %1298 = vmatprep.subr.mxu0 0.0
        %1299 = vmatpush1.msra.mxu0 0.0
        %1300 = vmatprep.subr.mxu0 0.0
        %1301 = vmatpush1.msra.mxu0 0.0
        %1302 = vmatprep.subr.mxu0 0.0
        %1303 = vmatpush1.msra.mxu0 0.0
        %1304 = vmatprep.subr.mxu0 0.0
        %1305 = vmatpush1.msra.mxu0 0.0
        %1306 = vmatprep.subr.mxu0 0.0
        %1307 = vmatpush1.msra.mxu0 0.0
        %1308 = vmatprep.subr.mxu0 0.0
        %1309 = vmatpush1.msra.mxu0 0.0
        %1310 = vmatprep.subr.mxu0 0.0
        %1311 = vmatpush1.msra.mxu0 0.0
        %1312 = vmatprep.subr.mxu0 0.0
        %1313 = vmatpush1.msra.mxu0 0.0
        %1314 = vmatprep.subr.mxu0 0.0
        %1315 = vmatpush1.msra.mxu0 0.0
        %1316 = vmatprep.subr.mxu0 0.0
        %1317 = vmatpush1.msra.mxu0 0.0
        %1318 = vmatprep.subr.mxu0 0.0
        %1319 = vmatpush1.msra.mxu0 0.0
        %1320 = vmatprep.subr.mxu0 0.0
        %1321 = vmatpush1.msra.mxu0 0.0
        %1322 = vmatprep.subr.mxu0 0.0
        %1323 = vmatpush1.msra.mxu0 0.0
        %1324 = vmatprep.subr.mxu0 0.0
        %1325 = vmatpush1.msra.mxu0 0.0
        %1326 = vmatprep.subr.mxu0 0.0
        %1327 = vmatpush1.msra.mxu0 0.0
        %1328 = vmatprep.subr.mxu0 0.0
        %1329 = vmatpush1.msra.mxu0 0.0
        %1330 = vmatprep.subr.mxu0 0.0
        %1331 = vmatpush1.msra.mxu0 0.0
        %1332 = vmatprep.subr.mxu0 0.0
        %1333 = vmatpush1.msra.mxu0 0.0
        %1334 = vmatprep.subr.mxu0 0.0
        %1335 = vmatpush1.msra.mxu0 0.0
        %1336 = vmatprep.subr.mxu0 0.0
        %1337 = vmatpush1.msra.mxu0 0.0
        %1338 = vmatprep.subr.mxu0 0.0
        %1339 = vmatpush1.msra.mxu0 0.0
        %1340 = vmatprep.subr.mxu0 0.0
        %1341 = vmatpush1.msra.mxu0 0.0
        %1342 = vmatprep.subr.mxu0 0.0
        %1343 = vmatpush1.msra.mxu0 0.0
        %1344 = vmatprep.mubr.f32.mxu0 0.0
        %1345 = vmatmul.mubr.f32.gmra.mrb[0].mxu0 %v1278
        %v1346 = vpop.f32.mrb[0].mxu0
        %v1347 = vadd.f32 %v1201, %v1346
        %v1348 = vpop.f32.mrb[0].mxu0
        %1349 = vdwg.mxu0
        %v1352 = vlaneseq
        %v1353 = vshrl.u32 %v1352, 7
        %v1354 = vsub.s32 0, %v1353
        %v1355 = vrot.slane %v1189, %v1354
        %v1356 = vlaneseq
        %v1357 = vshrl.u32 %v1356, 7
        %v1358 = vsub.s32 0, %v1357
        %v1359 = vrot.slane %v1191, %v1358
        %v1363 = vsel %vm863, %v1170, 0
        %1365 = vmatprep.subr.mxu0 0.0
        %1366 = vmatpush1.msra.mxu0 %v1176
        %1367 = vmatprep.subr.mxu0 0.0
        %1368 = vmatpush1.msra.mxu0 %v1177
        %1369 = vmatprep.subr.mxu0 0.0
        %1370 = vmatpush1.msra.mxu0 %v1178
        %1371 = vmatprep.subr.mxu0 0.0
        %1372 = vmatpush1.msra.mxu0 %v1179
        %1373 = vmatprep.subr.mxu0 0.0
        %1374 = vmatpush1.msra.mxu0 0.0
        %1375 = vmatprep.subr.mxu0 0.0
        %1376 = vmatpush1.msra.mxu0 0.0
        %1377 = vmatprep.subr.mxu0 0.0
        %1378 = vmatpush1.msra.mxu0 0.0
        %1379 = vmatprep.subr.mxu0 0.0
        %1380 = vmatpush1.msra.mxu0 0.0
        %1381 = vmatprep.subr.mxu0 0.0
        %1382 = vmatpush1.msra.mxu0 0.0
        %1383 = vmatprep.subr.mxu0 0.0
        %1384 = vmatpush1.msra.mxu0 0.0
        %1385 = vmatprep.subr.mxu0 0.0
        %1386 = vmatpush1.msra.mxu0 0.0
        %1387 = vmatprep.subr.mxu0 0.0
        %1388 = vmatpush1.msra.mxu0 0.0
        %1389 = vmatprep.subr.mxu0 0.0
        %1390 = vmatpush1.msra.mxu0 0.0
        %1391 = vmatprep.subr.mxu0 0.0
        %1392 = vmatpush1.msra.mxu0 0.0
        %1393 = vmatprep.subr.mxu0 0.0
        %1394 = vmatpush1.msra.mxu0 0.0
        %1395 = vmatprep.subr.mxu0 0.0
        %1396 = vmatpush1.msra.mxu0 0.0
        %1397 = vmatprep.subr.mxu0 0.0
        %1398 = vmatpush1.msra.mxu0 0.0
        %1399 = vmatprep.subr.mxu0 0.0
        %1400 = vmatpush1.msra.mxu0 0.0
        %1401 = vmatprep.subr.mxu0 0.0
        %1402 = vmatpush1.msra.mxu0 0.0
        %1403 = vmatprep.subr.mxu0 0.0
        %1404 = vmatpush1.msra.mxu0 0.0
        %1405 = vmatprep.subr.mxu0 0.0
        %1406 = vmatpush1.msra.mxu0 0.0
        %1407 = vmatprep.subr.mxu0 0.0
        %1408 = vmatpush1.msra.mxu0 0.0
        %1409 = vmatprep.subr.mxu0 0.0
        %1410 = vmatpush1.msra.mxu0 0.0
        %1411 = vmatprep.subr.mxu0 0.0
        %1412 = vmatpush1.msra.mxu0 0.0
        %1413 = vmatprep.subr.mxu0 0.0
        %1414 = vmatpush1.msra.mxu0 0.0
        %1415 = vmatprep.subr.mxu0 0.0
        %1416 = vmatpush1.msra.mxu0 0.0
        %1417 = vmatprep.subr.mxu0 0.0
        %1418 = vmatpush1.msra.mxu0 0.0
        %1419 = vmatprep.subr.mxu0 0.0
        %1420 = vmatpush1.msra.mxu0 0.0
        %1421 = vmatprep.subr.mxu0 0.0
        %1422 = vmatpush1.msra.mxu0 0.0
        %1423 = vmatprep.subr.mxu0 0.0
        %1424 = vmatpush1.msra.mxu0 0.0
        %1425 = vmatprep.subr.mxu0 0.0
        %1426 = vmatpush1.msra.mxu0 0.0
        %1427 = vmatprep.subr.mxu0 0.0
        %1428 = vmatpush1.msra.mxu0 0.0
        %1429 = vmatprep.mubr.f32.mxu0 0.0
        %1430 = vmatmul.mubr.f32.gmra.mrb[0].mxu0 %v1363
        %v1431 = vpop.f32.mrb[0].mxu0
        %v1432 = vadd.f32 %v1355, %v1431
        %v1433 = vpop.f32.mrb[0].mxu0
        %1434 = vdwg.mxu0
        %v1436 = vsel %vm863, %v1171, 0
        %1438 = vmatprep.subr.mxu0 0.0
        %1439 = vmatpush1.msra.mxu0 %v1184
        %1440 = vmatprep.subr.mxu0 0.0
        %1441 = vmatpush1.msra.mxu0 %v1185
        %1442 = vmatprep.subr.mxu0 0.0
        %1443 = vmatpush1.msra.mxu0 %v1186
        %1444 = vmatprep.subr.mxu0 0.0
        %1445 = vmatpush1.msra.mxu0 %v1187
        %1446 = vmatprep.subr.mxu0 0.0
        %1447 = vmatpush1.msra.mxu0 0.0
        %1448 = vmatprep.subr.mxu0 0.0
        %1449 = vmatpush1.msra.mxu0 0.0
        %1450 = vmatprep.subr.mxu0 0.0
        %1451 = vmatpush1.msra.mxu0 0.0
        %1452 = vmatprep.subr.mxu0 0.0
        %1453 = vmatpush1.msra.mxu0 0.0
        %1454 = vmatprep.subr.mxu0 0.0
        %1455 = vmatpush1.msra.mxu0 0.0
        %1456 = vmatprep.subr.mxu0 0.0
        %1457 = vmatpush1.msra.mxu0 0.0
        %1458 = vmatprep.subr.mxu0 0.0
        %1459 = vmatpush1.msra.mxu0 0.0
        %1460 = vmatprep.subr.mxu0 0.0
        %1461 = vmatpush1.msra.mxu0 0.0
        %1462 = vmatprep.subr.mxu0 0.0
        %1463 = vmatpush1.msra.mxu0 0.0
        %1464 = vmatprep.subr.mxu0 0.0
        %1465 = vmatpush1.msra.mxu0 0.0
        %1466 = vmatprep.subr.mxu0 0.0
        %1467 = vmatpush1.msra.mxu0 0.0
        %1468 = vmatprep.subr.mxu0 0.0
        %1469 = vmatpush1.msra.mxu0 0.0
        %1470 = vmatprep.subr.mxu0 0.0
        %1471 = vmatpush1.msra.mxu0 0.0
        %1472 = vmatprep.subr.mxu0 0.0
        %1473 = vmatpush1.msra.mxu0 0.0
        %1474 = vmatprep.subr.mxu0 0.0
        %1475 = vmatpush1.msra.mxu0 0.0
        %1476 = vmatprep.subr.mxu0 0.0
        %1477 = vmatpush1.msra.mxu0 0.0
        %1478 = vmatprep.subr.mxu0 0.0
        %1479 = vmatpush1.msra.mxu0 0.0
        %1480 = vmatprep.subr.mxu0 0.0
        %1481 = vmatpush1.msra.mxu0 0.0
        %1482 = vmatprep.subr.mxu0 0.0
        %1483 = vmatpush1.msra.mxu0 0.0
        %1484 = vmatprep.subr.mxu0 0.0
        %1485 = vmatpush1.msra.mxu0 0.0
        %1486 = vmatprep.subr.mxu0 0.0
        %1487 = vmatpush1.msra.mxu0 0.0
        %1488 = vmatprep.subr.mxu0 0.0
        %1489 = vmatpush1.msra.mxu0 0.0
        %1490 = vmatprep.subr.mxu0 0.0
        %1491 = vmatpush1.msra.mxu0 0.0
        %1492 = vmatprep.subr.mxu0 0.0
        %1493 = vmatpush1.msra.mxu0 0.0
        %1494 = vmatprep.subr.mxu0 0.0
        %1495 = vmatpush1.msra.mxu0 0.0
        %1496 = vmatprep.subr.mxu0 0.0
        %1497 = vmatpush1.msra.mxu0 0.0
        %1498 = vmatprep.subr.mxu0 0.0
        %1499 = vmatpush1.msra.mxu0 0.0
        %1500 = vmatprep.subr.mxu0 0.0
        %1501 = vmatpush1.msra.mxu0 0.0
        %1502 = vmatprep.mubr.f32.mxu0 0.0
        %1503 = vmatmul.mubr.f32.gmra.mrb[0].mxu0 %v1436
        %v1504 = vpop.f32.mrb[0].mxu0
        %v1505 = vadd.f32 %v1359, %v1504
        %v1506 = vpop.f32.mrb[0].mxu0
        %1507 = vdwg.mxu0
        %v1508 = vadd.f32 %v1274, %v1432
        %v1509 = vadd.f32 %v1347, %v1505
        %vm1510 = vcmask 15360
        %1511 = vst.msk [vmem:[%s487] sm:$0xff] %vm1510, %v1508
        %1512 = vst.msk [vmem:[%s487 + $0x8] sm:$0xff] %vm1510, %v1509
        %s1513 = smul.u32 2, %s22
        %p1514 = scmp.lt.s32.totalorder %s1513, 3
        %s1515 = scalar_select %p1514, %s1513, 3
        %s1516 = smul.addr %s1515, 8
        %s1517 = scalar_lea.vmem %s8, %s1516
        // Predicated region
        $region57: #{vectorized_continuous_q_forward.1} parent=51 // pred_check
          %p1518 = pneg %p248
        $region58: #{vectorized_continuous_q_forward.1} parent=51 // pred_check_branch
          %1520 = sbr.rel (%p1518) target = $region60
        $region59: #{vectorized_continuous_q_forward.1} parent=51 // pred_region
          %s1521 = smul.u32 2, %s22
        $region60: #{vectorized_continuous_q_forward.1} parent=51 // pred_fallthru
          _
      $region52: #{vectorized_continuous_q_forward.1} parent=5 // pred_fallthru
        _
      %p1522 = scmp.le.s32.totalorder 2, %s17
      // Predicated region
      $region61: #{vectorized_continuous_q_forward.1} parent=5 // pred_check
        %p1523 = pneg %p1522
      $region62: #{vectorized_continuous_q_forward.1} parent=5 // pred_check_branch
        %1525 = sbr.rel (%p1523) target = $region64
      $region63: #{vectorized_continuous_q_forward.1} parent=5 // pred_region
        %s1526 = ssub.s32 %s17, 2
        // Predicated region
        $region65: #{vectorized_continuous_q_forward.1} parent=63 // pred_check
          %p1527 = pneg %p254
        $region66: #{vectorized_continuous_q_forward.1} parent=63 // pred_check_branch
          %1529 = sbr.rel (%p1527) target = $region68
        $region67: #{vectorized_continuous_q_forward.1} parent=63 // pred_region
          %s1530 = smul.u32 2, %s23
          %p1531 = scmp.lt.s32.totalorder %s1530, 3
          %s1532 = scalar_select %p1531, %s1530, 3
          %s1533 = smul.addr %s1532, 8
          %s1534 = scalar_lea.vmem %s8, %s1533
        $region68: #{vectorized_continuous_q_forward.1} parent=63 // pred_fallthru
          _
      $region64: #{vectorized_continuous_q_forward.1} parent=5 // pred_fallthru
        _
    $region6: #{vectorized_continuous_q_forward.1} parent=1 // loop_footer
      %s21 = sadd.s32 1, %s17
    $region7: #{vectorized_continuous_q_forward.1} parent=1 // loop_footer_branch
      %16 = sbr.rel target = $region3
    $region8: #{vectorized_continuous_q_forward.1} parent=1 // loop_exit
      _
    %1535 = vsyncpa [#allocation3], 1
    %s1536 = scalar_lea.sflag [#allocation3], 1
    %1537 = vsyncpa %s1536, 1

</llo_original>
